<compile_context>
chip_gen: v7x
topology: tpu7x:2x2x1
jax: 0.10.0
libtpu: 0.0.40
codegen_flags: <defaults>
</compile_context>

<pallas_src>
import functools

import jax
import jax.numpy as jnp
from jax import lax
from jax.experimental import pallas as pl
from jax.experimental.pallas import tpu as pltpu


def _flash_self_attention_kernel(gamma_ref,   # SMEM (1,) f32
                                 q_ref,       # (TQ, Cq) bf16  projected query tile
                                 x_ref,       # (TQ, C)  f32   residual x (query rows)
                                 k_ref,       # (N,  Cq) bf16  per-batch keys (VMEM-resident)
                                 v_ref,       # (N,  C)  bf16  per-batch values (VMEM-resident)
                                 o_ref,       # (TQ, C)  f32   output tile == flash accumulator
                                 m_s,         # VMEM (TQ, 1) f32  running max
                                 l_s,         # VMEM (TQ, 1) f32  running sum
                                 *, tk):
    ki = pl.program_id(2)

    @pl.when(ki == 0)
    def _init():
        m_s[...] = jnp.full_like(m_s, -jnp.inf)
        l_s[...] = jnp.zeros_like(l_s)
        o_ref[...] = jnp.zeros_like(o_ref)

    # Slice the current key/value chunk out of the per-batch resident slabs.
    off = pl.multiple_of(ki * tk, tk)
    k_chunk = k_ref[pl.ds(off, tk), :]                               # (tk, Cq) bf16
    v_chunk = v_ref[pl.ds(off, tk), :]                               # (tk, C)  bf16

    # scores[i, j] = q_i . k_j  -- contract over Cq, "trans_b" form (no key
    # transpose / XLU relayout).
    s = lax.dot_general(q_ref[...], k_chunk, (((1,), (1,)), ((), ())),
                        preferred_element_type=jnp.float32)          # (TQ, tk) f32

    # Online softmax update (f32 statistics, bf16 matmul operands, f32 accum).
    m_prev = m_s[...]
    m_new = jnp.maximum(m_prev, jnp.max(s, axis=-1, keepdims=True))
    alpha = jnp.exp(m_prev - m_new)                                  # (TQ, 1)
    p = jnp.exp(s - m_new)                                           # (TQ, tk)
    l_s[...] = alpha * l_s[...] + jnp.sum(p, axis=-1, keepdims=True)
    o_ref[...] = alpha * o_ref[...] + jnp.dot(
        p.astype(jnp.bfloat16), v_chunk, preferred_element_type=jnp.float32)
    m_s[...] = m_new

    @pl.when(ki == pl.num_programs(2) - 1)
    def _finalize():
        inv_l = pl.reciprocal(l_s[...], approx=True)                 # EUP slot
        # gamma * softmax-normalized accumulator + f32 residual.
        o_ref[...] = gamma_ref[0] * (o_ref[...] * inv_l) + x_ref[...]


def _pick_tile(n, candidates):
    for t in candidates:
        if n % t == 0:
            return t
    return n


def _vmem_bytes(tq, tk, n, c, cq):
    """Rough per-call VMEM budget (double-buffered blocks + scratch + score tiles)."""
    db = 2  # pipeline double-buffering
    blocks = db * (tq * cq * 2       # q tile (bf16)
                   + tq * c * 4      # residual x tile (f32)
                   + n * cq * 2      # resident keys (bf16)
                   + n * c * 2       # resident values (bf16)
                   + tq * c * 4)     # output/accumulator tile (f32)
    scratch = 2 * tq * 4             # m, l
    intermediates = 3 * tq * tk * 4  # (tq, tk) score / prob tiles kept live
    return blocks + scratch + intermediates


def _default_tiles(n, b, c, cq):
    tk = _pick_tile(n, (512, 256, 128))
    tq = _pick_tile(n, (1024, 512, 256, 128))
    # v7x megacore guard: only the first two ("parallel") grid axes shard across
    # the 2 TensorCores -- keep at least 2 parallel grid units.
    while b * (n // tq) < 2 and tq % 2 == 0 and n % (tq // 2) == 0 and tq // 2 >= 8:
        tq //= 2
    # VMEM guard (v7x: 64 MiB physical / 32 MiB scoped default).
    while _vmem_bytes(tq, tk, n, c, cq) > (40 << 20) and tq > 128 and n % (tq // 2) == 0:
        tq //= 2
    return tq, tk


def self_attention(x_nchw, params, *, tq=None, tk=None):
    """x_nchw: (B, C, H, W) float32.  Returns (B, C, H, W) float32."""
    B, C, H, W = x_nchw.shape
    N = H * W
    Cq = params["wq"].shape[1]

    d_tq, d_tk = _default_tiles(N, B, C, Cq)
    tq = tq if tq is not None else d_tq
    tk = tk if tk is not None else d_tk
    assert N % tq == 0 and N % tk == 0, "spatial size must be divisible by the tiles"

    gamma = params["gamma"].astype(jnp.float32)                     # (1,)

    # NCHW -> channels-last (B, N, C); f32 copy kept for the residual add.
    x_flat = jnp.transpose(x_nchw.reshape(B, C, N), (0, 2, 1))      # (B, N, C) f32
    x_bf = x_flat.astype(jnp.bfloat16)

    # 1x1-conv projections hoisted to the wrapper (tiny full-width XLA matmuls).
    wq = params["wq"].astype(jnp.bfloat16)
    wk = params["wk"].astype(jnp.bfloat16)
    wv = params["wv"].astype(jnp.bfloat16)
    q_flat = (jnp.einsum("bnc,cd->bnd", x_bf, wq,
                         preferred_element_type=jnp.float32)
              + params["bq"]).astype(jnp.bfloat16)                  # (B, N, Cq)
    # bk dropped: adds a per-query-row constant to the energy; softmax over the
    # key axis is invariant to it (mathematically exact).
    k_flat = jnp.einsum("bnc,cd->bnd", x_bf, wk,
                        preferred_element_type=jnp.float32).astype(jnp.bfloat16)
    v_flat = (jnp.einsum("bnc,cd->bnd", x_bf, wv,
                         preferred_element_type=jnp.float32)
              + params["bv"]).astype(jnp.bfloat16)                  # (B, N, C)

    grid = (B, N // tq, N // tk)

    grid_spec = pltpu.PrefetchScalarGridSpec(
        num_scalar_prefetch=0,
        grid=grid,
        in_specs=[
            pl.BlockSpec(memory_space=pltpu.MemorySpace.SMEM),              # gamma
            pl.BlockSpec((None, tq, Cq), lambda b, qi, ki: (b, qi, 0)),     # q tile
            pl.BlockSpec((None, tq, C), lambda b, qi, ki: (b, qi, 0)),      # residual x tile (f32)
            # Block index constant across (qi, ki) => K/V DMA'd once per batch.
            pl.BlockSpec((None, N, Cq), lambda b, qi, ki: (b, 0, 0)),       # keys (resident)
            pl.BlockSpec((None, N, C), lambda b, qi, ki: (b, 0, 0)),        # values (resident)
        ],
        out_specs=pl.BlockSpec((None, tq, C), lambda b, qi, ki: (b, qi, 0)),
        scratch_shapes=[
            pltpu.VMEM((tq, 1), jnp.float32),    # running max
            pltpu.VMEM((tq, 1), jnp.float32),    # running sum
        ],
    )

    vmem_limit = int(min(max(2 * _vmem_bytes(tq, tk, N, C, Cq), 32 << 20), 48 << 20))

    out_flat = pl.pallas_call(
        functools.partial(_flash_self_attention_kernel, tk=tk),
        out_shape=jax.ShapeDtypeStruct((B, N, C), jnp.float32),
        grid_spec=grid_spec,
        compiler_params=pltpu.CompilerParams(
            dimension_semantics=("parallel", "parallel", "arbitrary"),
            vmem_limit_bytes=vmem_limit),
    )(gamma, q_flat, x_flat, k_flat, v_flat)

    # channels-last -> NCHW
    return jnp.transpose(out_flat, (0, 2, 1)).reshape(B, C, H, W)


def init_params(key, C):
    """Deterministic synthetic parameters (shapes from SelfAttention.__init__)."""
    assert C % 8 == 0 and C >= 8
    Cq = C // 8
    k1, k2, k3, k4, k5, k6 = jax.random.split(key, 6)
    s = 0.05
    # Conv2d 1x1 weights (Cout, Cin, 1, 1) stored transposed as (Cin, Cout) matmuls.
    wq = s * jax.random.normal(k1, (C, Cq), jnp.float32)
    bq = s * jax.random.normal(k2, (1, Cq), jnp.float32)
    wk = s * jax.random.normal(k3, (C, Cq), jnp.float32)
    bk = s * jax.random.normal(k4, (1, Cq), jnp.float32)
    wv = s * jax.random.normal(k5, (C, C), jnp.float32)
    bv = s * jax.random.normal(k6, (1, C), jnp.float32)
    # NOTE: the PyTorch module initializes gamma = 0 (out == x); use a nonzero
    # deterministic gamma here so the attention path actually contributes.
    gamma = jnp.array([0.5], jnp.float32)
    return dict(wq=wq, bq=bq, wk=wk, bk=bk, wv=wv, bv=bv, gamma=gamma)


def reference(x_nchw, p):
    """Pure-JAX f32 reference mirroring the PyTorch forward exactly."""
    B, C, H, W = x_nchw.shape
    N = H * W
    x_flat = jnp.transpose(x_nchw.reshape(B, C, N), (0, 2, 1))      # (B, N, C)
    q = x_flat @ p["wq"] + p["bq"]                                  # (B, N, Cq)
    k = x_flat @ p["wk"] + p["bk"]
    v = x_flat @ p["wv"] + p["bv"]                                  # (B, N, C)
    energy = jnp.einsum("bic,bjc->bij", q, k)
    attn = jax.nn.softmax(energy, axis=-1)
    out = jnp.einsum("bij,bjc->bic", attn, v)
    out = p["gamma"][0] * out + x_flat
    return jnp.transpose(out, (0, 2, 1)).reshape(B, C, H, W)


if __name__ == "__main__":
    # C = 128 (multiple of 128 -> lane-dense C axis), N = H*W = 256.
    B, C, H, W = 2, 128, 16, 16
    key = jax.random.PRNGKey(0)
    kx, kp = jax.random.split(key)
    x = jax.random.normal(kx, (B, C, H, W), jnp.float32)
    params = init_params(kp, C)
    ref = reference(x, params)

    # 1) Default tiles (tq = tk = 256 at this size: K/V resident, 1 key step).
    out = jax.block_until_ready(self_attention(x, params))
    assert out.shape == (B, C, H, W)
    err = float(jnp.max(jnp.abs(out - ref)))
    assert jnp.allclose(out, ref, atol=2e-2, rtol=2e-2), err

    # 2) Small tiles to exercise the multi-key-tile online-softmax accumulation
    #    and the parallel query axis (grid (2, 2, 2)).
    out2 = jax.block_until_ready(self_attention(x, params, tq=128, tk=128))
    err2 = float(jnp.max(jnp.abs(out2 - ref)))
    assert jnp.allclose(out2, ref, atol=2e-2, rtol=2e-2), err2

    print("KERNEL_OK")
</pallas_src>

<mosaic_0001>
module attributes {stable_mosaic.version = 11 : i64} {
  func.func @_flash_self_attention_kernel(%arg0: i32, %arg1: i32, %arg2: i32, %arg3: memref<1xf32, #tpu.memory_space<smem>>, %arg4: memref<1x256x16xbf16, #tpu.memory_space<vmem>>, %arg5: memref<1x256x128xf32, #tpu.memory_space<vmem>>, %arg6: memref<1x256x16xbf16, #tpu.memory_space<vmem>>, %arg7: memref<1x256x128xbf16, #tpu.memory_space<vmem>>, %arg8: memref<1x256x128xf32, #tpu.memory_space<vmem>>, %arg9: memref<256x1xf32, #tpu.memory_space<vmem>>, %arg10: memref<256x1xf32, #tpu.memory_space<vmem>>) attributes {dimension_semantics = [#tpu.dimension_semantics<parallel>, #tpu.dimension_semantics<parallel>, #tpu.dimension_semantics<arbitrary>], iteration_bounds = array<i64: 2, 1, 1>, scalar_prefetch = 0 : i64, scratch_operands = 2 : i64, tpu.core_type = #tpu.core_type<tc>, window_params = [{transform_indices = @transform_0, window_bounds = array<i64: 1>}, {transform_indices = @transform_1, window_bounds = array<i64: 1, 256, 16>}, {transform_indices = @transform_2, window_bounds = array<i64: 1, 256, 128>}, {transform_indices = @transform_3, window_bounds = array<i64: 1, 256, 16>}, {transform_indices = @transform_4, window_bounds = array<i64: 1, 256, 128>}, {transform_indices = @transform_5, window_bounds = array<i64: 1, 256, 128>}]} {
    %c0_i32 = arith.constant 0 : i32
    %0 = arith.cmpi eq, %arg2, %c0_i32 : i32
    %1 = arith.extui %0 : i1 to i32
    %c0_i32_0 = arith.constant 0 : i32
    %2 = arith.cmpi ne, %1, %c0_i32_0 : i32
    scf.if %2 {
      %cst_26 = arith.constant 0xFF800000 : f32
      %43 = vector.broadcast %cst_26 : f32 to vector<256x1xf32>
      %c0_27 = arith.constant 0 : index
      %c0_28 = arith.constant 0 : index
      %44 = vector.load %arg9[%c0_27, %c0_28] : memref<256x1xf32, #tpu.memory_space<vmem>>, vector<256x1xf32>
      tpu.vector_store %arg9[%c0_27, %c0_28], %43 {strides = array<i32>} : memref<256x1xf32, #tpu.memory_space<vmem>>, vector<256x1xf32>,
      %cst_29 = arith.constant 0.000000e+00 : f32
      %45 = vector.broadcast %cst_29 : f32 to vector<256x1xf32>
      %c0_30 = arith.constant 0 : index
      %c0_31 = arith.constant 0 : index
      %46 = vector.load %arg10[%c0_30, %c0_31] : memref<256x1xf32, #tpu.memory_space<vmem>>, vector<256x1xf32>
      tpu.vector_store %arg10[%c0_30, %c0_31], %45 {strides = array<i32>} : memref<256x1xf32, #tpu.memory_space<vmem>>, vector<256x1xf32>,
      %cst_32 = arith.constant 0.000000e+00 : f32
      %47 = vector.broadcast %cst_32 : f32 to vector<256x128xf32>
      %c0_33 = arith.constant 0 : index
      %c0_34 = arith.constant 0 : index
      %c0_35 = arith.constant 0 : index
      %48 = vector.load %arg8[%c0_33, %c0_34, %c0_35] : memref<1x256x128xf32, #tpu.memory_space<vmem>>, vector<1x256x128xf32>
      %49 = vector.shape_cast %48 : vector<1x256x128xf32> to vector<256x128xf32>
      %50 = vector.shape_cast %47 : vector<256x128xf32> to vector<1x256x128xf32>
      tpu.vector_store %arg8[%c0_33, %c0_34, %c0_35], %50 {strides = array<i32>} : memref<1x256x128xf32, #tpu.memory_space<vmem>>, vector<1x256x128xf32>,
    } else {
    }
    %c256_i32 = arith.constant 256 : i32
    %3 = arith.muli %arg2, %c256_i32 : i32
    %4 = tpu.assume_multiple %3, 256 : i32
    %c0 = arith.constant 0 : index
    %5 = arith.index_cast %4 : i32 to index
    %c0_1 = arith.constant 0 : index
    %6 = vector.load %arg6[%c0, %5, %c0_1] : memref<1x256x16xbf16, #tpu.memory_space<vmem>>, vector<1x256x16xbf16>
    %7 = vector.shape_cast %6 : vector<1x256x16xbf16> to vector<256x16xbf16>
    %c0_2 = arith.constant 0 : index
    %8 = arith.index_cast %4 : i32 to index
    %c0_3 = arith.constant 0 : index
    %9 = vector.load %arg7[%c0_2, %8, %c0_3] : memref<1x256x128xbf16, #tpu.memory_space<vmem>>, vector<1x256x128xbf16>
    %10 = vector.shape_cast %9 : vector<1x256x128xbf16> to vector<256x128xbf16>
    %c0_4 = arith.constant 0 : index
    %c0_5 = arith.constant 0 : index
    %c0_6 = arith.constant 0 : index
    %11 = vector.load %arg4[%c0_4, %c0_5, %c0_6] : memref<1x256x16xbf16, #tpu.memory_space<vmem>>, vector<1x256x16xbf16>
    %12 = vector.shape_cast %11 : vector<1x256x16xbf16> to vector<256x16xbf16>
    %cst = arith.constant dense<0.000000e+00> : vector<256x256xf32>
    %13 = tpu.matmul %12, %7, %cst {dimension_numbers = #tpu.dot_dimension_numbers<[1], [1], [0], [0], [0, 0, 1, 0], [], []>} : vector<256x16xbf16>, vector<256x16xbf16>, vector<256x256xf32> -> vector<256x256xf32>
    %c0_7 = arith.constant 0 : index
    %c0_8 = arith.constant 0 : index
    %14 = vector.load %arg9[%c0_7, %c0_8] : memref<256x1xf32, #tpu.memory_space<vmem>>, vector<256x1xf32>
    %cst_9 = arith.constant dense<0xFF800000> : vector<256xf32>
    %15 = vector.multi_reduction <maximumf>, %13, %cst_9 [1] : vector<256x256xf32> to vector<256xf32>
    %16 = vector.shape_cast %15 : vector<256xf32> to vector<256x1xf32>
    %17 = arith.maximumf %14, %16 : vector<256x1xf32>
    %18 = arith.subf %14, %17 : vector<256x1xf32>
    %19 = math.exp %18 : vector<256x1xf32>
    %20 = vector.broadcast %17 : vector<256x1xf32> to vector<256x256xf32>
    %21 = arith.subf %13, %20 : vector<256x256xf32>
    %22 = math.exp %21 : vector<256x256xf32>
    %c0_10 = arith.constant 0 : index
    %c0_11 = arith.constant 0 : index
    %23 = vector.load %arg10[%c0_10, %c0_11] : memref<256x1xf32, #tpu.memory_space<vmem>>, vector<256x1xf32>
    %24 = arith.mulf %19, %23 : vector<256x1xf32>
    %cst_12 = arith.constant dense<0.000000e+00> : vector<256xf32>
    %25 = vector.multi_reduction <add>, %22, %cst_12 [1] : vector<256x256xf32> to vector<256xf32>
    %26 = vector.shape_cast %25 : vector<256xf32> to vector<256x1xf32>
    %27 = arith.addf %24, %26 : vector<256x1xf32>
    %c0_13 = arith.constant 0 : index
    %c0_14 = arith.constant 0 : index
    %28 = vector.load %arg10[%c0_13, %c0_14] : memref<256x1xf32, #tpu.memory_space<vmem>>, vector<256x1xf32>
    tpu.vector_store %arg10[%c0_13, %c0_14], %27 {strides = array<i32>} : memref<256x1xf32, #tpu.memory_space<vmem>>, vector<256x1xf32>,
    %c0_15 = arith.constant 0 : index
    %c0_16 = arith.constant 0 : index
    %c0_17 = arith.constant 0 : index
    %29 = vector.load %arg8[%c0_15, %c0_16, %c0_17] : memref<1x256x128xf32, #tpu.memory_space<vmem>>, vector<1x256x128xf32>
    %30 = vector.shape_cast %29 : vector<1x256x128xf32> to vector<256x128xf32>
    %31 = vector.broadcast %19 : vector<256x1xf32> to vector<256x128xf32>
    %32 = arith.mulf %31, %30 : vector<256x128xf32>
    %33 = arith.truncf %22 : vector<256x256xf32> to vector<256x256xbf16>
    %cst_18 = arith.constant dense<0.000000e+00> : vector<256x128xf32>
    %34 = tpu.matmul %33, %10, %cst_18 {dimension_numbers = #tpu.dot_dimension_numbers<[1], [0], [0], [1], [0, 0, 1, 1], [], []>} : vector<256x256xbf16>, vector<256x128xbf16>, vector<256x128xf32> -> vector<256x128xf32>
    %35 = arith.addf %32, %34 : vector<256x128xf32>
    %c0_19 = arith.constant 0 : index
    %c0_20 = arith.constant 0 : index
    %c0_21 = arith.constant 0 : index
    %36 = vector.load %arg8[%c0_19, %c0_20, %c0_21] : memref<1x256x128xf32, #tpu.memory_space<vmem>>, vector<1x256x128xf32>
    %37 = vector.shape_cast %36 : vector<1x256x128xf32> to vector<256x128xf32>
    %38 = vector.shape_cast %35 : vector<256x128xf32> to vector<1x256x128xf32>
    tpu.vector_store %arg8[%c0_19, %c0_20, %c0_21], %38 {strides = array<i32>} : memref<1x256x128xf32, #tpu.memory_space<vmem>>, vector<1x256x128xf32>,
    %c0_22 = arith.constant 0 : index
    %c0_23 = arith.constant 0 : index
    %39 = vector.load %arg9[%c0_22, %c0_23] : memref<256x1xf32, #tpu.memory_space<vmem>>, vector<256x1xf32>
    tpu.vector_store %arg9[%c0_22, %c0_23], %17 {strides = array<i32>} : memref<256x1xf32, #tpu.memory_space<vmem>>, vector<256x1xf32>,
    %c0_i32_24 = arith.constant 0 : i32
    %40 = arith.cmpi eq, %arg2, %c0_i32_24 : i32
    %41 = arith.extui %40 : i1 to i32
    %c0_i32_25 = arith.constant 0 : i32
    %42 = arith.cmpi ne, %41, %c0_i32_25 : i32
    scf.if %42 {
      %c0_26 = arith.constant 0 : index
      %c0_27 = arith.constant 0 : index
      %43 = vector.load %arg10[%c0_26, %c0_27] : memref<256x1xf32, #tpu.memory_space<vmem>>, vector<256x1xf32>
      %44 = tpu.reciprocal %43 {approx = true} : vector<256x1xf32> -> vector<256x1xf32>
      %c0_28 = arith.constant 0 : index
      %45 = memref.load %arg3[%c0_28] : memref<1xf32, #tpu.memory_space<smem>>
      %c0_29 = arith.constant 0 : index
      %c0_30 = arith.constant 0 : index
      %c0_31 = arith.constant 0 : index
      %46 = vector.load %arg8[%c0_29, %c0_30, %c0_31] : memref<1x256x128xf32, #tpu.memory_space<vmem>>, vector<1x256x128xf32>
      %47 = vector.shape_cast %46 : vector<1x256x128xf32> to vector<256x128xf32>
      %48 = vector.broadcast %44 : vector<256x1xf32> to vector<256x128xf32>
      %49 = arith.mulf %47, %48 : vector<256x128xf32>
      %50 = vector.broadcast %45 : f32 to vector<256x128xf32>
      %51 = arith.mulf %50, %49 : vector<256x128xf32>
      %c0_32 = arith.constant 0 : index
      %c0_33 = arith.constant 0 : index
      %c0_34 = arith.constant 0 : index
      %52 = vector.load %arg5[%c0_32, %c0_33, %c0_34] : memref<1x256x128xf32, #tpu.memory_space<vmem>>, vector<1x256x128xf32>
      %53 = vector.shape_cast %52 : vector<1x256x128xf32> to vector<256x128xf32>
      %54 = arith.addf %51, %53 : vector<256x128xf32>
      %c0_35 = arith.constant 0 : index
      %c0_36 = arith.constant 0 : index
      %c0_37 = arith.constant 0 : index
      %55 = vector.load %arg8[%c0_35, %c0_36, %c0_37] : memref<1x256x128xf32, #tpu.memory_space<vmem>>, vector<1x256x128xf32>
      %56 = vector.shape_cast %55 : vector<1x256x128xf32> to vector<256x128xf32>
      %57 = vector.shape_cast %54 : vector<256x128xf32> to vector<1x256x128xf32>
      tpu.vector_store %arg8[%c0_35, %c0_36, %c0_37], %57 {strides = array<i32>} : memref<1x256x128xf32, #tpu.memory_space<vmem>>, vector<1x256x128xf32>,
    } else {
    }
    return
  }
  func.func @transform_0(%arg0: i32, %arg1: i32, %arg2: i32) -> i32 {
    %c0_i32 = arith.constant 0 : i32
    %c0_i32_0 = arith.constant 0 : i32
    return %c0_i32 : i32
  }
  func.func @transform_1(%arg0: i32, %arg1: i32, %arg2: i32) -> (i32, i32, i32) {
    %c0_i32 = arith.constant 0 : i32
    %c0_i32_0 = arith.constant 0 : i32
    return %arg0, %arg1, %c0_i32 : i32, i32, i32
  }
  func.func @transform_2(%arg0: i32, %arg1: i32, %arg2: i32) -> (i32, i32, i32) {
    %c0_i32 = arith.constant 0 : i32
    %c0_i32_0 = arith.constant 0 : i32
    return %arg0, %arg1, %c0_i32 : i32, i32, i32
  }
  func.func @transform_3(%arg0: i32, %arg1: i32, %arg2: i32) -> (i32, i32, i32) {
    %c0_i32 = arith.constant 0 : i32
    %c0_i32_0 = arith.constant 0 : i32
    %c0_i32_1 = arith.constant 0 : i32
    return %arg0, %c0_i32, %c0_i32_0 : i32, i32, i32
  }
  func.func @transform_4(%arg0: i32, %arg1: i32, %arg2: i32) -> (i32, i32, i32) {
    %c0_i32 = arith.constant 0 : i32
    %c0_i32_0 = arith.constant 0 : i32
    %c0_i32_1 = arith.constant 0 : i32
    return %arg0, %c0_i32, %c0_i32_0 : i32, i32, i32
  }
  func.func @transform_5(%arg0: i32, %arg1: i32, %arg2: i32) -> (i32, i32, i32) {
    %c0_i32 = arith.constant 0 : i32
    %c0_i32_0 = arith.constant 0 : i32
    return %arg0, %arg1, %c0_i32 : i32, i32, i32
  }
}

</mosaic_0001>

<llo_original>
// kernel: tpu_custom_call.1
$region0: #{tpu_custom_call.1}
  #allocation0 [shape = 'u32[]', space=smem, size = 0x4, offset = 0x4, fixed_abs, tag = 'smem constant byte address 0x4 - core index']
  #allocation1 [shape = 'u32[144,128]{1,0:T(1,128)}', space=vmem, size = 0x12000, scoped, tag = 'internal scratch']
  #allocation2 [shape = 'f32[256,1]{1,0:T(8,128)}', space=vmem, size = 0x20000, scoped, tag = 'scratch operand']
  #allocation3 [shape = 'f32[256,1]{1,0:T(8,128)}', space=vmem, size = 0x20000, scoped, tag = 'scratch operand']
  #allocation4 [shape = 'f32[1]{0:T(128)S(6)}', space=smem, size = 0x200, scoped, tag = 'scoped memory for tpu_custom_call.1']
  %s0 = inlined_call_operand.<no memory space> [shape: f32[1], index: 0, kind: input, shape index: {}]
  %s1 = inlined_call_operand.vmem [shape: bf16[2,256,16], index: 1, kind: input, shape index: {}]
  %s2 = inlined_call_operand.vmem [shape: f32[2,256,128], index: 2, kind: input, shape index: {}]
  %s3 = inlined_call_operand.vmem [shape: bf16[2,256,16], index: 3, kind: input, shape index: {}]
  %s4 = inlined_call_operand.hbm [shape: bf16[2,256,128], index: 4, kind: input, shape index: {}]
  %s5 = inlined_call_operand.hbm [shape: f32[2,256,128], index: 5, kind: output, shape index: {}]
  %s6 = sld [smem:[#allocation0]]
  $region65: #{tpu_custom_call.1} parent=0
    _
  %s8 = ssub.s32 1, %s6
  %s9 = scalar_select 0, %s8, %s6
  %10 = sst [smem:[#allocation4]] %s0
  $region1: #{tpu_custom_call.1} parent=0
    #allocation5 [shape = 'u8[131072]{0}', space=vmem, size = 0x20000, scoped, tag = 'input window, operand 4']
    #allocation6 [shape = 's32[2]{0}', space=sflag, size = 0x8, scoped, tag = 'scoped memory for tpu_custom_call.1']
    #allocation7 [shape = 's32[2]{0}', space=sflag, size = 0x8, scoped, tag = 'scoped memory for tpu_custom_call.1']
    #allocation8 [shape = 'u8[262144]{0}', space=vmem, size = 0x40000, scoped, tag = 'output window, operand 0']
    %11 = vsyncpa [#allocation6], 0
    %s12 = scalar_lea.sflag [#allocation6], 1
    %13 = vsyncpa %s12, 0
    %14 = vsyncpa [#allocation7], 0
    %s15 = scalar_lea.sflag [#allocation7], 1
    %16 = vsyncpa %s15, 0
    loop: start=0, step=1, limit=4
    $region2: #{tpu_custom_call.1} parent=1 // loop_pre_header
      _
    $region3: #{tpu_custom_call.1} parent=1 // loop_header
      %s18 = sphi 0, %s22
      %p19 = scmp.ge.s32.totalorder %s18, 4
      %s25 = sphi 0, %s44
      %s26 = sphi 0, %s40
      %s27 = sphi 0, %s36
      %s28 = sphi 0, %s25
      %s29 = sphi 0, %s26
      %s30 = sphi 0, %s27
      %s31 = sphi 0, %s28
      %s32 = sphi 0, %s29
      %s33 = sphi 0, %s30
      %s45 = sphi 0, %s45
      %s47 = sphi 0, %s45
      %s48 = sphi 0, %s47
      %s62 = sphi 0, %s48
      %s70 = sphi 0, %s72
      %s73 = sphi 0, %s70
      %s74 = sphi 0, %s73
      %s90 = sphi 0, %s74
      %s98 = sphi 0, %s100
      %s101 = sphi 0, %s98
      %s102 = sphi 0, %s101
      %s118 = sphi 0, %s102
      %s124 = sphi 0, %s126
      %s127 = sphi 0, %s124
      %s128 = sphi 0, %s127
      %s144 = sphi 0, %s128
      %s150 = sphi 0, %s152
      %s153 = sphi 0, %s150
      %s154 = sphi 0, %s153
      %s170 = sphi 0, %s154
      %s178 = sphi 0, %s180
      %s181 = sphi 0, %s178
      %s182 = sphi 0, %s181
      %s198 = sphi 0, %s182
    $region4: #{tpu_custom_call.1} parent=1 // loop_header_branch
      %21 = sbr.rel (%p19) target = $region8
    $region5: #{tpu_custom_call.1} parent=1 // loop_body
      %s23 = ssub.s32 %s18, 1
      %s24 = ssub.s32 %s18, 2
      %s34 = sadd.s32 1, %s27
      %p35 = scmp.ge.s32.totalorder %s34, 1
      %s36 = scalar_select %p35, 0, %s34
      %s37 = sadd.s32 1, %s26
      %s38 = scalar_select %p35, %s37, %s26
      %p39 = scmp.ge.s32.totalorder %s38, 1
      %s40 = scalar_select %p39, 0, %s38
      %s41 = sadd.s32 1, %s25
      %s42 = scalar_select %p39, %s41, %s25
      %p43 = scmp.ge.s32.totalorder %s42, 2
      %s44 = scalar_select %p43, 0, %s42
      %s46 = sadd.s32 %s45, 1
      %p49 = scmp.eq.s32.totalorder %s18, 1
      %p50 = scmp.ne.s32.totalorder %s45, %s47
      %p51 = scmp.eq.s32.totalorder %s18, 0
      %p52 = por %p50, %p51
      %p53 = scmp.ne.s32.totalorder %s45, %s47
      %p54 = scmp.eq.s32.totalorder %s23, 1
      %p55 = por %p53, %p54
      %p56 = scmp.ne.s32.totalorder %s47, %s48
      %p57 = scmp.eq.s32.totalorder %s23, 0
      %p58 = por %p56, %p57
      %p59 = scmp.ne.s32.totalorder %s47, %s48
      %p60 = scmp.eq.s32.totalorder %s24, 1
      %p61 = por %p59, %p60
      %p63 = scmp.ne.s32.totalorder %s48, %s62
      %p64 = scmp.eq.s32.totalorder %s24, 0
      %p65 = por %p63, %p64
      %s66 = ssub.s32 %s25, %s44
      %s67 = ssub.s32 %s26, %s40
      %s68 = sor.u32 %s66, %s67
      %p69 = scmp.eq.s32.totalorder %s68, 0
      %s71 = sadd.s32 %s70, 1
      %s72 = scalar_select %p69, %s70, %s71
      %p75 = pneg %p69
      %p76 = scmp.eq.s32.totalorder %s18, 1
      %p77 = por %p75, %p76
      %p78 = scmp.ne.s32.totalorder %s70, %s73
      %p79 = scmp.eq.s32.totalorder %s18, 0
      %p80 = por %p78, %p79
      %p81 = scmp.ne.s32.totalorder %s70, %s73
      %p82 = scmp.eq.s32.totalorder %s23, 1
      %p83 = por %p81, %p82
      %p84 = scmp.ne.s32.totalorder %s73, %s74
      %p85 = scmp.eq.s32.totalorder %s23, 0
      %p86 = por %p84, %p85
      %p87 = scmp.ne.s32.totalorder %s73, %s74
      %p88 = scmp.eq.s32.totalorder %s24, 1
      %p89 = por %p87, %p88
      %p91 = scmp.ne.s32.totalorder %s74, %s90
      %p92 = scmp.eq.s32.totalorder %s24, 0
      %p93 = por %p91, %p92
      %s94 = ssub.s32 %s25, %s44
      %s95 = ssub.s32 %s26, %s40
      %s96 = sor.u32 %s94, %s95
      %p97 = scmp.eq.s32.totalorder %s96, 0
      %s99 = sadd.s32 %s98, 1
      %s100 = scalar_select %p97, %s98, %s99
      %p103 = pneg %p97
      %p104 = scmp.eq.s32.totalorder %s18, 1
      %p105 = por %p103, %p104
      %p106 = scmp.ne.s32.totalorder %s98, %s101
      %p107 = scmp.eq.s32.totalorder %s18, 0
      %p108 = por %p106, %p107
      %p109 = scmp.ne.s32.totalorder %s98, %s101
      %p110 = scmp.eq.s32.totalorder %s23, 1
      %p111 = por %p109, %p110
      %p112 = scmp.ne.s32.totalorder %s101, %s102
      %p113 = scmp.eq.s32.totalorder %s23, 0
      %p114 = por %p112, %p113
      %p115 = scmp.ne.s32.totalorder %s101, %s102
      %p116 = scmp.eq.s32.totalorder %s24, 1
      %p117 = por %p115, %p116
      %p119 = scmp.ne.s32.totalorder %s102, %s118
      %p120 = scmp.eq.s32.totalorder %s24, 0
      %p121 = por %p119, %p120
      %s122 = ssub.s32 %s25, %s44
      %p123 = scmp.eq.s32.totalorder %s122, 0
      %s125 = sadd.s32 %s124, 1
      %s126 = scalar_select %p123, %s124, %s125
      %p129 = pneg %p123
      %p130 = scmp.eq.s32.totalorder %s18, 1
      %p131 = por %p129, %p130
      %p132 = scmp.ne.s32.totalorder %s124, %s127
      %p133 = scmp.eq.s32.totalorder %s18, 0
      %p134 = por %p132, %p133
      %p135 = scmp.ne.s32.totalorder %s124, %s127
      %p136 = scmp.eq.s32.totalorder %s23, 1
      %p137 = por %p135, %p136
      %p138 = scmp.ne.s32.totalorder %s127, %s128
      %p139 = scmp.eq.s32.totalorder %s23, 0
      %p140 = por %p138, %p139
      %p141 = scmp.ne.s32.totalorder %s127, %s128
      %p142 = scmp.eq.s32.totalorder %s24, 1
      %p143 = por %p141, %p142
      %p145 = scmp.ne.s32.totalorder %s128, %s144
      %p146 = scmp.eq.s32.totalorder %s24, 0
      %p147 = por %p145, %p146
      %s148 = ssub.s32 %s25, %s44
      %p149 = scmp.eq.s32.totalorder %s148, 0
      %s151 = sadd.s32 %s150, 1
      %s152 = scalar_select %p149, %s150, %s151
      %p155 = pneg %p149
      %p156 = scmp.eq.s32.totalorder %s18, 1
      %p157 = por %p155, %p156
      %p158 = scmp.ne.s32.totalorder %s150, %s153
      %p159 = scmp.eq.s32.totalorder %s18, 0
      %p160 = por %p158, %p159
      %p161 = scmp.ne.s32.totalorder %s150, %s153
      %p162 = scmp.eq.s32.totalorder %s23, 1
      %p163 = por %p161, %p162
      %p164 = scmp.ne.s32.totalorder %s153, %s154
      %p165 = scmp.eq.s32.totalorder %s23, 0
      %p166 = por %p164, %p165
      %p167 = scmp.ne.s32.totalorder %s153, %s154
      %p168 = scmp.eq.s32.totalorder %s24, 1
      %p169 = por %p167, %p168
      %p171 = scmp.ne.s32.totalorder %s154, %s170
      %p172 = scmp.eq.s32.totalorder %s24, 0
      %p173 = por %p171, %p172
      %s174 = ssub.s32 %s25, %s44
      %s175 = ssub.s32 %s26, %s40
      %s176 = sor.u32 %s174, %s175
      %p177 = scmp.eq.s32.totalorder %s176, 0
      %s179 = sadd.s32 %s178, 1
      %s180 = scalar_select %p177, %s178, %s179
      %p183 = pneg %p177
      %p184 = scmp.eq.s32.totalorder %s18, 1
      %p185 = por %p183, %p184
      %p186 = scmp.ne.s32.totalorder %s178, %s181
      %p187 = scmp.eq.s32.totalorder %s18, 0
      %p188 = por %p186, %p187
      %p189 = scmp.ne.s32.totalorder %s178, %s181
      %p190 = scmp.eq.s32.totalorder %s23, 1
      %p191 = por %p189, %p190
      %p192 = scmp.ne.s32.totalorder %s181, %s182
      %p193 = scmp.eq.s32.totalorder %s23, 0
      %p194 = por %p192, %p193
      %p195 = scmp.ne.s32.totalorder %s181, %s182
      %p196 = scmp.eq.s32.totalorder %s24, 1
      %p197 = por %p195, %p196
      %p199 = scmp.ne.s32.totalorder %s182, %s198
      %p200 = scmp.eq.s32.totalorder %s24, 0
      %p201 = por %p199, %p200
      %p202 = scmp.le.s32.totalorder 1, %s18
      %p203 = scmp.lt.s32.totalorder %s18, 3
      %p204 = pnand %p202, %p203
      %p205 = pneg %p204
      // Predicated region
      $region9: #{tpu_custom_call.1} parent=5 // pred_check
        _
      $region10: #{tpu_custom_call.1} parent=5 // pred_check_branch
        %207 = sbr.rel (%p204) target = $region12
      $region11: #{tpu_custom_call.1} parent=5 // pred_region
        %s208 = ssub.s32 %s18, 1
        // Predicated region
        $region13: #{tpu_custom_call.1} parent=11 // pred_check
          %p209 = pneg %p58
        $region14: #{tpu_custom_call.1} parent=11 // pred_check_branch
          %211 = sbr.rel (%p209) target = $region16
        $region15: #{tpu_custom_call.1} parent=11 // pred_region
          _
        $region16: #{tpu_custom_call.1} parent=11 // pred_fallthru
          _
      $region12: #{tpu_custom_call.1} parent=5 // pred_fallthru
        _
      %p212 = scmp.lt.s32.totalorder %s18, 2
      // Predicated region
      $region17: #{tpu_custom_call.1} parent=5 // pred_check
        %p213 = pneg %p212
      $region18: #{tpu_custom_call.1} parent=5 // pred_check_branch
        %215 = sbr.rel (%p213) target = $region20
      $region19: #{tpu_custom_call.1} parent=5 // pred_region
        // Predicated region
        $region21: #{tpu_custom_call.1} parent=19 // pred_check
          %p216 = pneg %p80
        $region22: #{tpu_custom_call.1} parent=19 // pred_check_branch
          %218 = sbr.rel (%p216) target = $region24
        $region23: #{tpu_custom_call.1} parent=19 // pred_region
          %s219 = smul.u32 32, %s26
          %p220 = scmp.lt.s32.totalorder %s25, 1
          %s221 = scalar_select %p220, %s25, 1
          %p222 = scmp.lt.s32.totalorder %s219, 31
          %s223 = scalar_select %p222, %s219, 31
          %s224 = smul.addr %s221, 32
          %s225 = sadd.s32 %s223, %s224
          %s226 = smul.addr %s225, 4
          %s227 = scalar_lea.vmem %s1, %s226
          %s228 = smul.u32 32, %s26
        $region24: #{tpu_custom_call.1} parent=19 // pred_fallthru
          _
        // Predicated region
        $region25: #{tpu_custom_call.1} parent=19 // pred_check
          %p229 = pneg %p108
        $region26: #{tpu_custom_call.1} parent=19 // pred_check_branch
          %231 = sbr.rel (%p229) target = $region28
        $region27: #{tpu_custom_call.1} parent=19 // pred_region
          %s232 = smul.u32 32, %s26
          %p233 = scmp.lt.s32.totalorder %s25, 1
          %s234 = scalar_select %p233, %s25, 1
          %p235 = scmp.lt.s32.totalorder %s232, 31
          %s236 = scalar_select %p235, %s232, 31
          %s237 = smul.addr %s234, 32
          %s238 = sadd.s32 %s236, %s237
          %s239 = smul.addr %s238, 8
          %s240 = scalar_lea.vmem %s2, %s239
          %s241 = smul.u32 32, %s26
        $region28: #{tpu_custom_call.1} parent=19 // pred_fallthru
          _
        // Predicated region
        $region29: #{tpu_custom_call.1} parent=19 // pred_check
          %p242 = pneg %p134
        $region30: #{tpu_custom_call.1} parent=19 // pred_check_branch
          %244 = sbr.rel (%p242) target = $region32
        $region31: #{tpu_custom_call.1} parent=19 // pred_region
          %p245 = scmp.lt.s32.totalorder %s25, 1
          %s246 = scalar_select %p245, %s25, 1
          %s247 = smul.addr %s246, 32
          %s248 = smul.addr %s247, 4
          %s249 = scalar_lea.vmem %s3, %s248
        $region32: #{tpu_custom_call.1} parent=19 // pred_fallthru
          _
        // Predicated region
        $region33: #{tpu_custom_call.1} parent=19 // pred_check
          %p250 = pneg %p160
        $region34: #{tpu_custom_call.1} parent=19 // pred_check_branch
          %252 = sbr.rel (%p250) target = $region36
        $region35: #{tpu_custom_call.1} parent=19 // pred_region
          %s253 = sand.u32 %s150, 1
          %s254 = scalar_lea.sflag [#allocation6], %s253
          %s255 = sand.u32 %s150, 1
          %s256 = smul.addr %s255, 128
          %s257 = scalar_lea.vmem [#allocation5], %s256
          %s259 = ssub.s32 2048, 2048
          %260 = vsyncadd %s254, %s259
          %s261 = smul.addr %s25, 32
          %s262 = smul.addr %s261, 64
          %s263 = scalar_lea.hbm %s4, %s262
          %s264 = sshll.u32 %s257, 4
          %s265 = int_to_ptr.vmem [resolvable:$true] %s264
          %270 = dma.hbm_to_vmem [thread:$0]  %s263, 2048, %s265, %s254, 64, 64, 4
        $region36: #{tpu_custom_call.1} parent=19 // pred_fallthru
          _
      $region20: #{tpu_custom_call.1} parent=5 // pred_fallthru
        _
      %p271 = scmp.le.s32.totalorder 1, %s18
      %p272 = scmp.lt.s32.totalorder %s18, 3
      %p273 = pnand %p271, %p272
      %p274 = pneg %p273
      // Predicated region
      $region37: #{tpu_custom_call.1} parent=5 // pred_check
        _
      $region38: #{tpu_custom_call.1} parent=5 // pred_check_branch
        %276 = sbr.rel (%p273) target = $region40
      $region39: #{tpu_custom_call.1} parent=5 // pred_region
        %s277 = ssub.s32 %s18, 1
        %s278 = sand.u32 %s153, 1
        %s279 = scalar_lea.sflag [#allocation6], %s278
        %s280 = sand.u32 %s153, 1
        %s281 = smul.addr %s280, 128
        %s282 = scalar_lea.vmem [#allocation5], %s281
        // Predicated region
        $region41: #{tpu_custom_call.1} parent=39 // pred_check
          %p283 = pneg %p166
        $region42: #{tpu_custom_call.1} parent=39 // pred_check_branch
          %285 = sbr.rel (%p283) target = $region44
        $region43: #{tpu_custom_call.1} parent=39 // pred_region
          %286 = dma.done %s279, 2048
        $region44: #{tpu_custom_call.1} parent=39 // pred_fallthru
          _
        %p287 = pneg %p58
        %p288 = pneg %p55
        %s289 = smul.u32 32, %s29
        %p290 = scmp.lt.s32.totalorder %s28, 1
        %s291 = scalar_select %p290, %s28, 1
        %p292 = scmp.lt.s32.totalorder %s289, 31
        %s293 = scalar_select %p292, %s289, 31
        %s294 = smul.addr %s291, 32
        %s295 = sadd.s32 %s293, %s294
        %s296 = smul.addr %s295, 4
        %s297 = scalar_lea.vmem %s1, %s296
        %p298 = pneg %p86
        %p299 = pneg %p83
        %s300 = smul.u32 32, %s29
        %p301 = scmp.lt.s32.totalorder %s28, 1
        %s302 = scalar_select %p301, %s28, 1
        %p303 = scmp.lt.s32.totalorder %s300, 31
        %s304 = scalar_select %p303, %s300, 31
        %s305 = smul.addr %s302, 32
        %s306 = sadd.s32 %s304, %s305
        %s307 = smul.addr %s306, 8
        %s308 = scalar_lea.vmem %s2, %s307
        %p309 = pneg %p114
        %p310 = pneg %p111
        %p311 = scmp.lt.s32.totalorder %s28, 1
        %s312 = scalar_select %p311, %s28, 1
        %s313 = smul.addr %s312, 32
        %s314 = smul.addr %s313, 4
        %s315 = scalar_lea.vmem %s3, %s314
        %p316 = pneg %p140
        %p317 = pneg %p137
        %s318 = sand.u32 %s153, 1
        %s319 = scalar_lea.sflag [#allocation6], %s318
        %s320 = sand.u32 %s153, 1
        %s321 = smul.addr %s320, 128
        %s322 = scalar_lea.vmem [#allocation5], %s321
        %p323 = pneg %p166
        %p324 = pneg %p163
        %p325 = pneg %p194
        %p326 = pneg %p191
        %s327 = sand.u32 %s181, 1
        %s328 = scalar_lea.sflag [#allocation7], %s327
        %s329 = sand.u32 %s181, 1
        %s330 = smul.addr %s329, 256
        %s331 = scalar_lea.vmem [#allocation8], %s330
        %s332 = smul.u32 32, %s29
        %p333 = scmp.lt.s32.totalorder %s28, 1
        %s334 = scalar_select %p333, %s28, 1
        %p335 = scmp.lt.s32.totalorder %s332, 31
        %s336 = scalar_select %p335, %s332, 31
        %s337 = smul.addr %s334, 32
        %s338 = sadd.s32 %s336, %s337
        %s339 = smul.addr %s338, 4
        %s340 = scalar_lea.vmem %s1, %s339
        %s341 = smul.u32 32, %s29
        %s342 = smul.u32 32, %s29
        %p343 = scmp.lt.s32.totalorder %s28, 1
        %s344 = scalar_select %p343, %s28, 1
        %p345 = scmp.lt.s32.totalorder %s342, 31
        %s346 = scalar_select %p345, %s342, 31
        %s347 = smul.addr %s344, 32
        %s348 = sadd.s32 %s346, %s347
        %s349 = smul.addr %s348, 8
        %s350 = scalar_lea.vmem %s2, %s349
        %s351 = smul.u32 32, %s29
        %p352 = scmp.lt.s32.totalorder %s28, 1
        %s353 = scalar_select %p352, %s28, 1
        %s354 = smul.addr %s353, 32
        %s355 = smul.addr %s354, 4
        %s356 = scalar_lea.vmem %s3, %s355
        %s357 = smul.u32 32, %s29
        %p359 = scmp.eq.s32.totalorder %s30, 0
        // Predicated region
        $region45: #{tpu_custom_call.1} parent=39 // pred_check
          %p360 = pneg %p359
        $region46: #{tpu_custom_call.1} parent=39 // pred_check_branch
          %362 = sbr.rel (%p360) target = $region48
        $region47: #{tpu_custom_call.1} parent=39 // pred_region
          %vm363 = vcmask 7168
          %364 = vst.msk [vmem:[#allocation2] sm:$0xff] %vm363, -inf
          %365 = vst.msk [vmem:[#allocation2 + $0x8] sm:$0xff] %vm363, -inf
          %366 = vst.msk [vmem:[#allocation2 + $0x10] sm:$0xff] %vm363, -inf
          %367 = vst.msk [vmem:[#allocation2 + $0x18] sm:$0xff] %vm363, -inf
          %368 = vst.msk [vmem:[#allocation2 + $0x20] sm:$0xff] %vm363, -inf
          %369 = vst.msk [vmem:[#allocation2 + $0x28] sm:$0xff] %vm363, -inf
          %370 = vst.msk [vmem:[#allocation2 + $0x30] sm:$0xff] %vm363, -inf
          %371 = vst.msk [vmem:[#allocation2 + $0x38] sm:$0xff] %vm363, -inf
          %372 = vst.msk [vmem:[#allocation2 + $0x40] sm:$0xff] %vm363, -inf
          %373 = vst.msk [vmem:[#allocation2 + $0x48] sm:$0xff] %vm363, -inf
          %374 = vst.msk [vmem:[#allocation2 + $0x50] sm:$0xff] %vm363, -inf
          %375 = vst.msk [vmem:[#allocation2 + $0x58] sm:$0xff] %vm363, -inf
          %376 = vst.msk [vmem:[#allocation2 + $0x60] sm:$0xff] %vm363, -inf
          %377 = vst.msk [vmem:[#allocation2 + $0x68] sm:$0xff] %vm363, -inf
          %378 = vst.msk [vmem:[#allocation2 + $0x70] sm:$0xff] %vm363, -inf
          %379 = vst.msk [vmem:[#allocation2 + $0x78] sm:$0xff] %vm363, -inf
          %380 = vst.msk [vmem:[#allocation2 + $0x80] sm:$0xff] %vm363, -inf
          %381 = vst.msk [vmem:[#allocation2 + $0x88] sm:$0xff] %vm363, -inf
          %382 = vst.msk [vmem:[#allocation2 + $0x90] sm:$0xff] %vm363, -inf
          %383 = vst.msk [vmem:[#allocation2 + $0x98] sm:$0xff] %vm363, -inf
          %384 = vst.msk [vmem:[#allocation2 + $0xa0] sm:$0xff] %vm363, -inf
          %385 = vst.msk [vmem:[#allocation2 + $0xa8] sm:$0xff] %vm363, -inf
          %386 = vst.msk [vmem:[#allocation2 + $0xb0] sm:$0xff] %vm363, -inf
          %387 = vst.msk [vmem:[#allocation2 + $0xb8] sm:$0xff] %vm363, -inf
          %388 = vst.msk [vmem:[#allocation2 + $0xc0] sm:$0xff] %vm363, -inf
          %389 = vst.msk [vmem:[#allocation2 + $0xc8] sm:$0xff] %vm363, -inf
          %390 = vst.msk [vmem:[#allocation2 + $0xd0] sm:$0xff] %vm363, -inf
          %391 = vst.msk [vmem:[#allocation2 + $0xd8] sm:$0xff] %vm363, -inf
          %392 = vst.msk [vmem:[#allocation2 + $0xe0] sm:$0xff] %vm363, -inf
          %393 = vst.msk [vmem:[#allocation2 + $0xe8] sm:$0xff] %vm363, -inf
          %394 = vst.msk [vmem:[#allocation2 + $0xf0] sm:$0xff] %vm363, -inf
          %395 = vst.msk [vmem:[#allocation2 + $0xf8] sm:$0xff] %vm363, -inf
          %396 = vst.msk [vmem:[#allocation3] sm:$0xff] %vm363, 0.0
          %397 = vst.msk [vmem:[#allocation3 + $0x8] sm:$0xff] %vm363, 0.0
          %398 = vst.msk [vmem:[#allocation3 + $0x10] sm:$0xff] %vm363, 0.0
          %399 = vst.msk [vmem:[#allocation3 + $0x18] sm:$0xff] %vm363, 0.0
          %400 = vst.msk [vmem:[#allocation3 + $0x20] sm:$0xff] %vm363, 0.0
          %401 = vst.msk [vmem:[#allocation3 + $0x28] sm:$0xff] %vm363, 0.0
          %402 = vst.msk [vmem:[#allocation3 + $0x30] sm:$0xff] %vm363, 0.0
          %403 = vst.msk [vmem:[#allocation3 + $0x38] sm:$0xff] %vm363, 0.0
          %404 = vst.msk [vmem:[#allocation3 + $0x40] sm:$0xff] %vm363, 0.0
          %405 = vst.msk [vmem:[#allocation3 + $0x48] sm:$0xff] %vm363, 0.0
          %406 = vst.msk [vmem:[#allocation3 + $0x50] sm:$0xff] %vm363, 0.0
          %407 = vst.msk [vmem:[#allocation3 + $0x58] sm:$0xff] %vm363, 0.0
          %408 = vst.msk [vmem:[#allocation3 + $0x60] sm:$0xff] %vm363, 0.0
          %409 = vst.msk [vmem:[#allocation3 + $0x68] sm:$0xff] %vm363, 0.0
          %410 = vst.msk [vmem:[#allocation3 + $0x70] sm:$0xff] %vm363, 0.0
          %411 = vst.msk [vmem:[#allocation3 + $0x78] sm:$0xff] %vm363, 0.0
          %412 = vst.msk [vmem:[#allocation3 + $0x80] sm:$0xff] %vm363, 0.0
          %413 = vst.msk [vmem:[#allocation3 + $0x88] sm:$0xff] %vm363, 0.0
          %414 = vst.msk [vmem:[#allocation3 + $0x90] sm:$0xff] %vm363, 0.0
          %415 = vst.msk [vmem:[#allocation3 + $0x98] sm:$0xff] %vm363, 0.0
          %416 = vst.msk [vmem:[#allocation3 + $0xa0] sm:$0xff] %vm363, 0.0
          %417 = vst.msk [vmem:[#allocation3 + $0xa8] sm:$0xff] %vm363, 0.0
          %418 = vst.msk [vmem:[#allocation3 + $0xb0] sm:$0xff] %vm363, 0.0
          %419 = vst.msk [vmem:[#allocation3 + $0xb8] sm:$0xff] %vm363, 0.0
          %420 = vst.msk [vmem:[#allocation3 + $0xc0] sm:$0xff] %vm363, 0.0
          %421 = vst.msk [vmem:[#allocation3 + $0xc8] sm:$0xff] %vm363, 0.0
          %422 = vst.msk [vmem:[#allocation3 + $0xd0] sm:$0xff] %vm363, 0.0
          %423 = vst.msk [vmem:[#allocation3 + $0xd8] sm:$0xff] %vm363, 0.0
          %424 = vst.msk [vmem:[#allocation3 + $0xe0] sm:$0xff] %vm363, 0.0
          %425 = vst.msk [vmem:[#allocation3 + $0xe8] sm:$0xff] %vm363, 0.0
          %426 = vst.msk [vmem:[#allocation3 + $0xf0] sm:$0xff] %vm363, 0.0
          %427 = vst.msk [vmem:[#allocation3 + $0xf8] sm:$0xff] %vm363, 0.0
          %428 = vst [vmem:[%s331] sm:$0xff] 0.0
          %429 = vst [vmem:[%s331 + $0x8] sm:$0xff] 0.0
          %430 = vst [vmem:[%s331 + $0x10] sm:$0xff] 0.0
          %431 = vst [vmem:[%s331 + $0x18] sm:$0xff] 0.0
          %432 = vst [vmem:[%s331 + $0x20] sm:$0xff] 0.0
          %433 = vst [vmem:[%s331 + $0x28] sm:$0xff] 0.0
          %434 = vst [vmem:[%s331 + $0x30] sm:$0xff] 0.0
          %435 = vst [vmem:[%s331 + $0x38] sm:$0xff] 0.0
          %436 = vst [vmem:[%s331 + $0x40] sm:$0xff] 0.0
          %437 = vst [vmem:[%s331 + $0x48] sm:$0xff] 0.0
          %438 = vst [vmem:[%s331 + $0x50] sm:$0xff] 0.0
          %439 = vst [vmem:[%s331 + $0x58] sm:$0xff] 0.0
          %440 = vst [vmem:[%s331 + $0x60] sm:$0xff] 0.0
          %441 = vst [vmem:[%s331 + $0x68] sm:$0xff] 0.0
          %442 = vst [vmem:[%s331 + $0x70] sm:$0xff] 0.0
          %443 = vst [vmem:[%s331 + $0x78] sm:$0xff] 0.0
          %444 = vst [vmem:[%s331 + $0x80] sm:$0xff] 0.0
          %445 = vst [vmem:[%s331 + $0x88] sm:$0xff] 0.0
          %446 = vst [vmem:[%s331 + $0x90] sm:$0xff] 0.0
          %447 = vst [vmem:[%s331 + $0x98] sm:$0xff] 0.0
          %448 = vst [vmem:[%s331 + $0xa0] sm:$0xff] 0.0
          %449 = vst [vmem:[%s331 + $0xa8] sm:$0xff] 0.0
          %450 = vst [vmem:[%s331 + $0xb0] sm:$0xff] 0.0
          %451 = vst [vmem:[%s331 + $0xb8] sm:$0xff] 0.0
          %452 = vst [vmem:[%s331 + $0xc0] sm:$0xff] 0.0
          %453 = vst [vmem:[%s331 + $0xc8] sm:$0xff] 0.0
          %454 = vst [vmem:[%s331 + $0xd0] sm:$0xff] 0.0
          %455 = vst [vmem:[%s331 + $0xd8] sm:$0xff] 0.0
          %456 = vst [vmem:[%s331 + $0xe0] sm:$0xff] 0.0
          %457 = vst [vmem:[%s331 + $0xe8] sm:$0xff] 0.0
          %458 = vst [vmem:[%s331 + $0xf0] sm:$0xff] 0.0
          %459 = vst [vmem:[%s331 + $0xf8] sm:$0xff] 0.0
        $region48: #{tpu_custom_call.1} parent=39 // pred_fallthru
          _
        %s460 = smul.u32 %s30, 256
        %s461 = sshra.s32 %s460, 3
        %s462 = sand.u32 %s460, 7
        %s463 = smul.addr %s461, 4
        %s464 = scalar_lea.vmem %s356, %s463
        %v465 = vld [vmem:[%s464] sm:$0xf]
        %v466 = vld [vmem:[%s464 + $0x4] sm:$0xf]
        %v467 = vld [vmem:[%s464 + $0x8] sm:$0xf]
        %v468 = vld [vmem:[%s464 + $0xc] sm:$0xf]
        %v469 = vld [vmem:[%s464 + $0x10] sm:$0xf]
        %v470 = vld [vmem:[%s464 + $0x14] sm:$0xf]
        %v471 = vld [vmem:[%s464 + $0x18] sm:$0xf]
        %v472 = vld [vmem:[%s464 + $0x1c] sm:$0xf]
        %v473 = vld [vmem:[%s464 + $0x20] sm:$0xf]
        %v474 = vld [vmem:[%s464 + $0x24] sm:$0xf]
        %v475 = vld [vmem:[%s464 + $0x28] sm:$0xf]
        %v476 = vld [vmem:[%s464 + $0x2c] sm:$0xf]
        %v477 = vld [vmem:[%s464 + $0x30] sm:$0xf]
        %v478 = vld [vmem:[%s464 + $0x34] sm:$0xf]
        %v479 = vld [vmem:[%s464 + $0x38] sm:$0xf]
        %v480 = vld [vmem:[%s464 + $0x3c] sm:$0xf]
        %v481 = vld [vmem:[%s464 + $0x40] sm:$0xf]
        %v482 = vld [vmem:[%s464 + $0x44] sm:$0xf]
        %v483 = vld [vmem:[%s464 + $0x48] sm:$0xf]
        %v484 = vld [vmem:[%s464 + $0x4c] sm:$0xf]
        %v485 = vld [vmem:[%s464 + $0x50] sm:$0xf]
        %v486 = vld [vmem:[%s464 + $0x54] sm:$0xf]
        %v487 = vld [vmem:[%s464 + $0x58] sm:$0xf]
        %v488 = vld [vmem:[%s464 + $0x5c] sm:$0xf]
        %v489 = vld [vmem:[%s464 + $0x60] sm:$0xf]
        %v490 = vld [vmem:[%s464 + $0x64] sm:$0xf]
        %v491 = vld [vmem:[%s464 + $0x68] sm:$0xf]
        %v492 = vld [vmem:[%s464 + $0x6c] sm:$0xf]
        %v493 = vld [vmem:[%s464 + $0x70] sm:$0xf]
        %v494 = vld [vmem:[%s464 + $0x74] sm:$0xf]
        %v495 = vld [vmem:[%s464 + $0x78] sm:$0xf]
        %v496 = vld [vmem:[%s464 + $0x7c] sm:$0xf]
        %s497 = smul.addr %s461, 4
        %s498 = scalar_lea.vmem %s282, %s497 [#allocation5]
        %v499 = vld [vmem:[%s498] sm:$0xf]
        %v500 = vld [vmem:[%s498 + $0x4] sm:$0xf]
        %v501 = vld [vmem:[%s498 + $0x8] sm:$0xf]
        %v502 = vld [vmem:[%s498 + $0xc] sm:$0xf]
        %v503 = vld [vmem:[%s498 + $0x10] sm:$0xf]
        %v504 = vld [vmem:[%s498 + $0x14] sm:$0xf]
        %v505 = vld [vmem:[%s498 + $0x18] sm:$0xf]
        %v506 = vld [vmem:[%s498 + $0x1c] sm:$0xf]
        %v507 = vld [vmem:[%s498 + $0x20] sm:$0xf]
        %v508 = vld [vmem:[%s498 + $0x24] sm:$0xf]
        %v509 = vld [vmem:[%s498 + $0x28] sm:$0xf]
        %v510 = vld [vmem:[%s498 + $0x2c] sm:$0xf]
        %v511 = vld [vmem:[%s498 + $0x30] sm:$0xf]
        %v512 = vld [vmem:[%s498 + $0x34] sm:$0xf]
        %v513 = vld [vmem:[%s498 + $0x38] sm:$0xf]
        %v514 = vld [vmem:[%s498 + $0x3c] sm:$0xf]
        %v515 = vld [vmem:[%s498 + $0x40] sm:$0xf]
        %v516 = vld [vmem:[%s498 + $0x44] sm:$0xf]
        %v517 = vld [vmem:[%s498 + $0x48] sm:$0xf]
        %v518 = vld [vmem:[%s498 + $0x4c] sm:$0xf]
        %v519 = vld [vmem:[%s498 + $0x50] sm:$0xf]
        %v520 = vld [vmem:[%s498 + $0x54] sm:$0xf]
        %v521 = vld [vmem:[%s498 + $0x58] sm:$0xf]
        %v522 = vld [vmem:[%s498 + $0x5c] sm:$0xf]
        %v523 = vld [vmem:[%s498 + $0x60] sm:$0xf]
        %v524 = vld [vmem:[%s498 + $0x64] sm:$0xf]
        %v525 = vld [vmem:[%s498 + $0x68] sm:$0xf]
        %v526 = vld [vmem:[%s498 + $0x6c] sm:$0xf]
        %v527 = vld [vmem:[%s498 + $0x70] sm:$0xf]
        %v528 = vld [vmem:[%s498 + $0x74] sm:$0xf]
        %v529 = vld [vmem:[%s498 + $0x78] sm:$0xf]
        %v530 = vld [vmem:[%s498 + $0x7c] sm:$0xf]
        %v531 = vld [vmem:[%s340] sm:$0xf]
        %v532 = vld [vmem:[%s340 + $0x4] sm:$0xf]
        %v533 = vld [vmem:[%s340 + $0x8] sm:$0xf]
        %v534 = vld [vmem:[%s340 + $0xc] sm:$0xf]
        %v535 = vld [vmem:[%s340 + $0x10] sm:$0xf]
        %v536 = vld [vmem:[%s340 + $0x14] sm:$0xf]
        %v537 = vld [vmem:[%s340 + $0x18] sm:$0xf]
        %v538 = vld [vmem:[%s340 + $0x1c] sm:$0xf]
        %v539 = vld [vmem:[%s340 + $0x20] sm:$0xf]
        %v540 = vld [vmem:[%s340 + $0x24] sm:$0xf]
        %v541 = vld [vmem:[%s340 + $0x28] sm:$0xf]
        %v542 = vld [vmem:[%s340 + $0x2c] sm:$0xf]
        %v543 = vld [vmem:[%s340 + $0x30] sm:$0xf]
        %v544 = vld [vmem:[%s340 + $0x34] sm:$0xf]
        %v545 = vld [vmem:[%s340 + $0x38] sm:$0xf]
        %v546 = vld [vmem:[%s340 + $0x3c] sm:$0xf]
        %v547 = vld [vmem:[%s340 + $0x40] sm:$0xf]
        %v548 = vld [vmem:[%s340 + $0x44] sm:$0xf]
        %v549 = vld [vmem:[%s340 + $0x48] sm:$0xf]
        %v550 = vld [vmem:[%s340 + $0x4c] sm:$0xf]
        %v551 = vld [vmem:[%s340 + $0x50] sm:$0xf]
        %v552 = vld [vmem:[%s340 + $0x54] sm:$0xf]
        %v553 = vld [vmem:[%s340 + $0x58] sm:$0xf]
        %v554 = vld [vmem:[%s340 + $0x5c] sm:$0xf]
        %v555 = vld [vmem:[%s340 + $0x60] sm:$0xf]
        %v556 = vld [vmem:[%s340 + $0x64] sm:$0xf]
        %v557 = vld [vmem:[%s340 + $0x68] sm:$0xf]
        %v558 = vld [vmem:[%s340 + $0x6c] sm:$0xf]
        %v559 = vld [vmem:[%s340 + $0x70] sm:$0xf]
        %v560 = vld [vmem:[%s340 + $0x74] sm:$0xf]
        %v561 = vld [vmem:[%s340 + $0x78] sm:$0xf]
        %v562 = vld [vmem:[%s340 + $0x7c] sm:$0xf]
        %v595 = vunpack.c.l.b16 %v531
        %v596 = vunpack.c.l.b16 %v532
        %v597 = vunpack.c.l.b16 %v533
        %v598 = vunpack.c.l.b16 %v534
        %v599 = vunpack.c.l.b16 %v535
        %v600 = vunpack.c.l.b16 %v536
        %v601 = vunpack.c.l.b16 %v537
        %v602 = vunpack.c.l.b16 %v538
        %v603 = vunpack.c.l.b16 %v539
        %v604 = vunpack.c.l.b16 %v540
        %v605 = vunpack.c.l.b16 %v541
        %v606 = vunpack.c.l.b16 %v542
        %v607 = vunpack.c.l.b16 %v543
        %v608 = vunpack.c.l.b16 %v544
        %v609 = vunpack.c.l.b16 %v545
        %v610 = vunpack.c.l.b16 %v546
        %v611 = vunpack.c.l.b16 %v547
        %v612 = vunpack.c.l.b16 %v548
        %v613 = vunpack.c.l.b16 %v549
        %v614 = vunpack.c.l.b16 %v550
        %v615 = vunpack.c.l.b16 %v551
        %v616 = vunpack.c.l.b16 %v552
        %v617 = vunpack.c.l.b16 %v553
        %v618 = vunpack.c.l.b16 %v554
        %v619 = vunpack.c.l.b16 %v555
        %v620 = vunpack.c.l.b16 %v556
        %v621 = vunpack.c.l.b16 %v557
        %v622 = vunpack.c.l.b16 %v558
        %v623 = vunpack.c.l.b16 %v559
        %v624 = vunpack.c.l.b16 %v560
        %v625 = vunpack.c.l.b16 %v561
        %v626 = vunpack.c.l.b16 %v562
        %v627 = vpack.c.b16 %v596, %v595
        %v628 = vpack.c.b16 %v598, %v597
        %v629 = vpack.c.b16 %v600, %v599
        %v630 = vpack.c.b16 %v602, %v601
        %v631 = vpack.c.b16 %v604, %v603
        %v632 = vpack.c.b16 %v606, %v605
        %v633 = vpack.c.b16 %v608, %v607
        %v634 = vpack.c.b16 %v610, %v609
        %v635 = vpack.c.b16 %v612, %v611
        %v636 = vpack.c.b16 %v614, %v613
        %v637 = vpack.c.b16 %v616, %v615
        %v638 = vpack.c.b16 %v618, %v617
        %v639 = vpack.c.b16 %v620, %v619
        %v640 = vpack.c.b16 %v622, %v621
        %v641 = vpack.c.b16 %v624, %v623
        %v642 = vpack.c.b16 %v626, %v625
        %v675 = vunpack.c.l.b16 %v465
        %v676 = vunpack.c.l.b16 %v466
        %v677 = vunpack.c.l.b16 %v467
        %v678 = vunpack.c.l.b16 %v468
        %v679 = vunpack.c.l.b16 %v469
        %v680 = vunpack.c.l.b16 %v470
        %v681 = vunpack.c.l.b16 %v471
        %v682 = vunpack.c.l.b16 %v472
        %v683 = vunpack.c.l.b16 %v473
        %v684 = vunpack.c.l.b16 %v474
        %v685 = vunpack.c.l.b16 %v475
        %v686 = vunpack.c.l.b16 %v476
        %v687 = vunpack.c.l.b16 %v477
        %v688 = vunpack.c.l.b16 %v478
        %v689 = vunpack.c.l.b16 %v479
        %v690 = vunpack.c.l.b16 %v480
        %v691 = vunpack.c.l.b16 %v481
        %v692 = vunpack.c.l.b16 %v482
        %v693 = vunpack.c.l.b16 %v483
        %v694 = vunpack.c.l.b16 %v484
        %v695 = vunpack.c.l.b16 %v485
        %v696 = vunpack.c.l.b16 %v486
        %v697 = vunpack.c.l.b16 %v487
        %v698 = vunpack.c.l.b16 %v488
        %v699 = vunpack.c.l.b16 %v489
        %v700 = vunpack.c.l.b16 %v490
        %v701 = vunpack.c.l.b16 %v491
        %v702 = vunpack.c.l.b16 %v492
        %v703 = vunpack.c.l.b16 %v493
        %v704 = vunpack.c.l.b16 %v494
        %v705 = vunpack.c.l.b16 %v495
        %v706 = vunpack.c.l.b16 %v496
        %v707 = vpack.c.b16 %v676, %v675
        %v708 = vpack.c.b16 %v678, %v677
        %v709 = vpack.c.b16 %v680, %v679
        %v710 = vpack.c.b16 %v682, %v681
        %v711 = vpack.c.b16 %v684, %v683
        %v712 = vpack.c.b16 %v686, %v685
        %v713 = vpack.c.b16 %v688, %v687
        %v714 = vpack.c.b16 %v690, %v689
        %v715 = vpack.c.b16 %v692, %v691
        %v716 = vpack.c.b16 %v694, %v693
        %v717 = vpack.c.b16 %v696, %v695
        %v718 = vpack.c.b16 %v698, %v697
        %v719 = vpack.c.b16 %v700, %v699
        %v720 = vpack.c.b16 %v702, %v701
        %v721 = vpack.c.b16 %v704, %v703
        %v722 = vpack.c.b16 %v706, %v705
        %vm723 = vcmask 130048
        %v725 = vsel %vm723, %v627, 0
        %v728 = vsel %vm723, %v628, 0
        %v731 = vsel %vm723, %v629, 0
        %v734 = vsel %vm723, %v630, 0
        %v737 = vsel %vm723, %v631, 0
        %v740 = vsel %vm723, %v632, 0
        %v743 = vsel %vm723, %v633, 0
        %v746 = vsel %vm723, %v634, 0
        %v749 = vsel %vm723, %v635, 0
        %v752 = vsel %vm723, %v636, 0
        %v755 = vsel %vm723, %v637, 0
        %v758 = vsel %vm723, %v638, 0
        %v761 = vsel %vm723, %v639, 0
        %v764 = vsel %vm723, %v640, 0
        %v767 = vsel %vm723, %v641, 0
        %v770 = vsel %vm723, %v642, 0
        %v773 = vsel %vm723, %v707, 0
        %v776 = vsel %vm723, %v708, 0
        %v779 = vsel %vm723, %v709, 0
        %v782 = vsel %vm723, %v710, 0
        %v785 = vsel %vm723, %v711, 0
        %v788 = vsel %vm723, %v712, 0
        %v791 = vsel %vm723, %v713, 0
        %v794 = vsel %vm723, %v714, 0
        %v797 = vsel %vm723, %v715, 0
        %v800 = vsel %vm723, %v716, 0
        %v803 = vsel %vm723, %v717, 0
        %v806 = vsel %vm723, %v718, 0
        %v809 = vsel %vm723, %v719, 0
        %v812 = vsel %vm723, %v720, 0
        %v815 = vsel %vm723, %v721, 0
        %v818 = vsel %vm723, %v722, 0
        %820 = vmatprep.subr.bf16.mxu0 0
        %821 = vmatpush1.bf16.xpose.msra.mxu0 %v773
        %822 = vmatprep.subr.bf16.mxu0 0
        %823 = vmatpush1.bf16.xpose.msra.mxu0 %v776
        %824 = vmatprep.subr.bf16.mxu0 0
        %825 = vmatpush1.bf16.xpose.msra.mxu0 %v779
        %826 = vmatprep.subr.bf16.mxu0 0
        %827 = vmatpush1.bf16.xpose.msra.mxu0 %v782
        %828 = vmatprep.subr.bf16.mxu0 0
        %829 = vmatpush1.bf16.xpose.msra.mxu0 %v785
        %830 = vmatprep.subr.bf16.mxu0 0
        %831 = vmatpush1.bf16.xpose.msra.mxu0 %v788
        %832 = vmatprep.subr.bf16.mxu0 0
        %833 = vmatpush1.bf16.xpose.msra.mxu0 %v791
        %834 = vmatprep.subr.bf16.mxu0 0
        %835 = vmatpush1.bf16.xpose.msra.mxu0 %v794
        %836 = vmatprep.subr.bf16.mxu0 0
        %837 = vmatpush1.bf16.xpose.msra.mxu0 %v797
        %838 = vmatprep.subr.bf16.mxu0 0
        %839 = vmatpush1.bf16.xpose.msra.mxu0 %v800
        %840 = vmatprep.subr.bf16.mxu0 0
        %841 = vmatpush1.bf16.xpose.msra.mxu0 %v803
        %842 = vmatprep.subr.bf16.mxu0 0
        %843 = vmatpush1.bf16.xpose.msra.mxu0 %v806
        %844 = vmatprep.subr.bf16.mxu0 0
        %845 = vmatpush1.bf16.xpose.msra.mxu0 %v809
        %846 = vmatprep.subr.bf16.mxu0 0
        %847 = vmatpush1.bf16.xpose.msra.mxu0 %v812
        %848 = vmatprep.subr.bf16.mxu0 0
        %849 = vmatpush1.bf16.xpose.msra.mxu0 %v815
        %850 = vmatprep.subr.bf16.mxu0 0
        %851 = vmatpush1.bf16.xpose.msra.mxu0 %v818
        %852 = vmatprep.mubr.bf16.mxu0 0
        %853 = vmatmul.mubr.bf16.gmra.mrb[0].mxu0 %v725
        %v854 = vpop.f32.mrb[0].mxu0
        %v855 = vadd.f32 0.0, %v854
        %v856 = vpop.f32.mrb[0].mxu0
        %v857 = vadd.f32 0.0, %v856
        %v858 = vpop.f32.mrb[0].mxu0
        %v859 = vadd.f32 0.0, %v858
        %v860 = vpop.f32.mrb[0].mxu0
        %v861 = vadd.f32 0.0, %v860
        %862 = vmatprep.mubr.bf16.mxu0 0
        %863 = vmatmul.mubr.bf16.gmra.mrb[0].mxu0 %v728
        %v864 = vpop.f32.mrb[0].mxu0
        %v865 = vadd.f32 0.0, %v864
        %v866 = vpop.f32.mrb[0].mxu0
        %v867 = vadd.f32 0.0, %v866
        %v868 = vpop.f32.mrb[0].mxu0
        %v869 = vadd.f32 0.0, %v868
        %v870 = vpop.f32.mrb[0].mxu0
        %v871 = vadd.f32 0.0, %v870
        %872 = vmatprep.mubr.bf16.mxu0 0
        %873 = vmatmul.mubr.bf16.gmra.mrb[0].mxu0 %v731
        %v874 = vpop.f32.mrb[0].mxu0
        %v875 = vadd.f32 0.0, %v874
        %v876 = vpop.f32.mrb[0].mxu0
        %v877 = vadd.f32 0.0, %v876
        %v878 = vpop.f32.mrb[0].mxu0
        %v879 = vadd.f32 0.0, %v878
        %v880 = vpop.f32.mrb[0].mxu0
        %v881 = vadd.f32 0.0, %v880
        %882 = vmatprep.mubr.bf16.mxu0 0
        %883 = vmatmul.mubr.bf16.gmra.mrb[0].mxu0 %v734
        %v884 = vpop.f32.mrb[0].mxu0
        %v885 = vadd.f32 0.0, %v884
        %v886 = vpop.f32.mrb[0].mxu0
        %v887 = vadd.f32 0.0, %v886
        %v888 = vpop.f32.mrb[0].mxu0
        %v889 = vadd.f32 0.0, %v888
        %v890 = vpop.f32.mrb[0].mxu0
        %v891 = vadd.f32 0.0, %v890
        %892 = vmatprep.mubr.bf16.mxu0 0
        %893 = vmatmul.mubr.bf16.gmra.mrb[0].mxu0 %v737
        %v894 = vpop.f32.mrb[0].mxu0
        %v895 = vadd.f32 0.0, %v894
        %v896 = vpop.f32.mrb[0].mxu0
        %v897 = vadd.f32 0.0, %v896
        %v898 = vpop.f32.mrb[0].mxu0
        %v899 = vadd.f32 0.0, %v898
        %v900 = vpop.f32.mrb[0].mxu0
        %v901 = vadd.f32 0.0, %v900
        %902 = vmatprep.mubr.bf16.mxu0 0
        %903 = vmatmul.mubr.bf16.gmra.mrb[0].mxu0 %v740
        %v904 = vpop.f32.mrb[0].mxu0
        %v905 = vadd.f32 0.0, %v904
        %v906 = vpop.f32.mrb[0].mxu0
        %v907 = vadd.f32 0.0, %v906
        %v908 = vpop.f32.mrb[0].mxu0
        %v909 = vadd.f32 0.0, %v908
        %v910 = vpop.f32.mrb[0].mxu0
        %v911 = vadd.f32 0.0, %v910
        %912 = vmatprep.mubr.bf16.mxu0 0
        %913 = vmatmul.mubr.bf16.gmra.mrb[0].mxu0 %v743
        %v914 = vpop.f32.mrb[0].mxu0
        %v915 = vadd.f32 0.0, %v914
        %v916 = vpop.f32.mrb[0].mxu0
        %v917 = vadd.f32 0.0, %v916
        %v918 = vpop.f32.mrb[0].mxu0
        %v919 = vadd.f32 0.0, %v918
        %v920 = vpop.f32.mrb[0].mxu0
        %v921 = vadd.f32 0.0, %v920
        %922 = vmatprep.mubr.bf16.mxu0 0
        %923 = vmatmul.mubr.bf16.gmra.mrb[0].mxu0 %v746
        %v924 = vpop.f32.mrb[0].mxu0
        %v925 = vadd.f32 0.0, %v924
        %v926 = vpop.f32.mrb[0].mxu0
        %v927 = vadd.f32 0.0, %v926
        %v928 = vpop.f32.mrb[0].mxu0
        %v929 = vadd.f32 0.0, %v928
        %v930 = vpop.f32.mrb[0].mxu0
        %v931 = vadd.f32 0.0, %v930
        %932 = vmatprep.mubr.bf16.mxu0 0
        %933 = vmatmul.mubr.bf16.gmra.mrb[0].mxu0 %v749
        %v934 = vpop.f32.mrb[0].mxu0
        %v935 = vadd.f32 0.0, %v934
        %v936 = vpop.f32.mrb[0].mxu0
        %v937 = vadd.f32 0.0, %v936
        %v938 = vpop.f32.mrb[0].mxu0
        %v939 = vadd.f32 0.0, %v938
        %v940 = vpop.f32.mrb[0].mxu0
        %v941 = vadd.f32 0.0, %v940
        %942 = vmatprep.mubr.bf16.mxu0 0
        %943 = vmatmul.mubr.bf16.gmra.mrb[0].mxu0 %v752
        %v944 = vpop.f32.mrb[0].mxu0
        %v945 = vadd.f32 0.0, %v944
        %v946 = vpop.f32.mrb[0].mxu0
        %v947 = vadd.f32 0.0, %v946
        %v948 = vpop.f32.mrb[0].mxu0
        %v949 = vadd.f32 0.0, %v948
        %v950 = vpop.f32.mrb[0].mxu0
        %v951 = vadd.f32 0.0, %v950
        %952 = vmatprep.mubr.bf16.mxu0 0
        %953 = vmatmul.mubr.bf16.gmra.mrb[0].mxu0 %v755
        %v954 = vpop.f32.mrb[0].mxu0
        %v955 = vadd.f32 0.0, %v954
        %v956 = vpop.f32.mrb[0].mxu0
        %v957 = vadd.f32 0.0, %v956
        %v958 = vpop.f32.mrb[0].mxu0
        %v959 = vadd.f32 0.0, %v958
        %v960 = vpop.f32.mrb[0].mxu0
        %v961 = vadd.f32 0.0, %v960
        %962 = vmatprep.mubr.bf16.mxu0 0
        %963 = vmatmul.mubr.bf16.gmra.mrb[0].mxu0 %v758
        %v964 = vpop.f32.mrb[0].mxu0
        %v965 = vadd.f32 0.0, %v964
        %v966 = vpop.f32.mrb[0].mxu0
        %v967 = vadd.f32 0.0, %v966
        %v968 = vpop.f32.mrb[0].mxu0
        %v969 = vadd.f32 0.0, %v968
        %v970 = vpop.f32.mrb[0].mxu0
        %v971 = vadd.f32 0.0, %v970
        %972 = vmatprep.mubr.bf16.mxu0 0
        %973 = vmatmul.mubr.bf16.gmra.mrb[0].mxu0 %v761
        %v974 = vpop.f32.mrb[0].mxu0
        %v975 = vadd.f32 0.0, %v974
        %v976 = vpop.f32.mrb[0].mxu0
        %v977 = vadd.f32 0.0, %v976
        %v978 = vpop.f32.mrb[0].mxu0
        %v979 = vadd.f32 0.0, %v978
        %v980 = vpop.f32.mrb[0].mxu0
        %v981 = vadd.f32 0.0, %v980
        %982 = vmatprep.mubr.bf16.mxu0 0
        %983 = vmatmul.mubr.bf16.gmra.mrb[0].mxu0 %v764
        %v984 = vpop.f32.mrb[0].mxu0
        %v985 = vadd.f32 0.0, %v984
        %v986 = vpop.f32.mrb[0].mxu0
        %v987 = vadd.f32 0.0, %v986
        %v988 = vpop.f32.mrb[0].mxu0
        %v989 = vadd.f32 0.0, %v988
        %v990 = vpop.f32.mrb[0].mxu0
        %v991 = vadd.f32 0.0, %v990
        %992 = vmatprep.mubr.bf16.mxu0 0
        %993 = vmatmul.mubr.bf16.gmra.mrb[0].mxu0 %v767
        %v994 = vpop.f32.mrb[0].mxu0
        %v995 = vadd.f32 0.0, %v994
        %v996 = vpop.f32.mrb[0].mxu0
        %v997 = vadd.f32 0.0, %v996
        %v998 = vpop.f32.mrb[0].mxu0
        %v999 = vadd.f32 0.0, %v998
        %v1000 = vpop.f32.mrb[0].mxu0
        %v1001 = vadd.f32 0.0, %v1000
        %1002 = vmatprep.mubr.bf16.mxu0 0
        %1003 = vmatmul.mubr.bf16.gmra.mrb[0].mxu0 %v770
        %v1004 = vpop.f32.mrb[0].mxu0
        %v1005 = vadd.f32 0.0, %v1004
        %v1006 = vpop.f32.mrb[0].mxu0
        %v1007 = vadd.f32 0.0, %v1006
        %v1008 = vpop.f32.mrb[0].mxu0
        %v1009 = vadd.f32 0.0, %v1008
        %v1010 = vpop.f32.mrb[0].mxu0
        %v1011 = vadd.f32 0.0, %v1010
        %1012 = vdwg.mxu0
        %v1013 = vld [vmem:[#allocation2] sm:$0xff]
        %v1014 = vld [vmem:[#allocation2 + $0x8] sm:$0xff]
        %v1015 = vld [vmem:[#allocation2 + $0x10] sm:$0xff]
        %v1016 = vld [vmem:[#allocation2 + $0x18] sm:$0xff]
        %v1017 = vld [vmem:[#allocation2 + $0x20] sm:$0xff]
        %v1018 = vld [vmem:[#allocation2 + $0x28] sm:$0xff]
        %v1019 = vld [vmem:[#allocation2 + $0x30] sm:$0xff]
        %v1020 = vld [vmem:[#allocation2 + $0x38] sm:$0xff]
        %v1021 = vld [vmem:[#allocation2 + $0x40] sm:$0xff]
        %v1022 = vld [vmem:[#allocation2 + $0x48] sm:$0xff]
        %v1023 = vld [vmem:[#allocation2 + $0x50] sm:$0xff]
        %v1024 = vld [vmem:[#allocation2 + $0x58] sm:$0xff]
        %v1025 = vld [vmem:[#allocation2 + $0x60] sm:$0xff]
        %v1026 = vld [vmem:[#allocation2 + $0x68] sm:$0xff]
        %v1027 = vld [vmem:[#allocation2 + $0x70] sm:$0xff]
        %v1028 = vld [vmem:[#allocation2 + $0x78] sm:$0xff]
        %v1029 = vld [vmem:[#allocation2 + $0x80] sm:$0xff]
        %v1030 = vld [vmem:[#allocation2 + $0x88] sm:$0xff]
        %v1031 = vld [vmem:[#allocation2 + $0x90] sm:$0xff]
        %v1032 = vld [vmem:[#allocation2 + $0x98] sm:$0xff]
        %v1033 = vld [vmem:[#allocation2 + $0xa0] sm:$0xff]
        %v1034 = vld [vmem:[#allocation2 + $0xa8] sm:$0xff]
        %v1035 = vld [vmem:[#allocation2 + $0xb0] sm:$0xff]
        %v1036 = vld [vmem:[#allocation2 + $0xb8] sm:$0xff]
        %v1037 = vld [vmem:[#allocation2 + $0xc0] sm:$0xff]
        %v1038 = vld [vmem:[#allocation2 + $0xc8] sm:$0xff]
        %v1039 = vld [vmem:[#allocation2 + $0xd0] sm:$0xff]
        %v1040 = vld [vmem:[#allocation2 + $0xd8] sm:$0xff]
        %v1041 = vld [vmem:[#allocation2 + $0xe0] sm:$0xff]
        %v1042 = vld [vmem:[#allocation2 + $0xe8] sm:$0xff]
        %v1043 = vld [vmem:[#allocation2 + $0xf0] sm:$0xff]
        %v1044 = vld [vmem:[#allocation2 + $0xf8] sm:$0xff]
        %v1045 = vmax.f32 %v855, %v857
        %1046 = vmax.xlane.f32.xlu0 %v1045
        %v1047 = vpop.xlane.xlu0 %1046
        %v1048 = vmax.f32 %v859, %v861
        %1049 = vmax.xlane.f32.xlu0 %v1048
        %v1050 = vpop.xlane.xlu0 %1049
        %v1051 = vmax.f32 %v865, %v867
        %1052 = vmax.xlane.f32.xlu0 %v1051
        %v1053 = vpop.xlane.xlu0 %1052
        %v1054 = vmax.f32 %v869, %v871
        %1055 = vmax.xlane.f32.xlu0 %v1054
        %v1056 = vpop.xlane.xlu0 %1055
        %v1057 = vmax.f32 %v875, %v877
        %1058 = vmax.xlane.f32.xlu0 %v1057
        %v1059 = vpop.xlane.xlu0 %1058
        %v1060 = vmax.f32 %v879, %v881
        %1061 = vmax.xlane.f32.xlu0 %v1060
        %v1062 = vpop.xlane.xlu0 %1061
        %v1063 = vmax.f32 %v885, %v887
        %1064 = vmax.xlane.f32.xlu0 %v1063
        %v1065 = vpop.xlane.xlu0 %1064
        %v1066 = vmax.f32 %v889, %v891
        %1067 = vmax.xlane.f32.xlu0 %v1066
        %v1068 = vpop.xlane.xlu0 %1067
        %v1069 = vmax.f32 %v895, %v897
        %1070 = vmax.xlane.f32.xlu0 %v1069
        %v1071 = vpop.xlane.xlu0 %1070
        %v1072 = vmax.f32 %v899, %v901
        %1073 = vmax.xlane.f32.xlu0 %v1072
        %v1074 = vpop.xlane.xlu0 %1073
        %v1075 = vmax.f32 %v905, %v907
        %1076 = vmax.xlane.f32.xlu0 %v1075
        %v1077 = vpop.xlane.xlu0 %1076
        %v1078 = vmax.f32 %v909, %v911
        %1079 = vmax.xlane.f32.xlu0 %v1078
        %v1080 = vpop.xlane.xlu0 %1079
        %v1081 = vmax.f32 %v915, %v917
        %1082 = vmax.xlane.f32.xlu0 %v1081
        %v1083 = vpop.xlane.xlu0 %1082
        %v1084 = vmax.f32 %v919, %v921
        %1085 = vmax.xlane.f32.xlu0 %v1084
        %v1086 = vpop.xlane.xlu0 %1085
        %v1087 = vmax.f32 %v925, %v927
        %1088 = vmax.xlane.f32.xlu0 %v1087
        %v1089 = vpop.xlane.xlu0 %1088
        %v1090 = vmax.f32 %v929, %v931
        %1091 = vmax.xlane.f32.xlu0 %v1090
        %v1092 = vpop.xlane.xlu0 %1091
        %v1093 = vmax.f32 %v935, %v937
        %1094 = vmax.xlane.f32.xlu0 %v1093
        %v1095 = vpop.xlane.xlu0 %1094
        %v1096 = vmax.f32 %v939, %v941
        %1097 = vmax.xlane.f32.xlu0 %v1096
        %v1098 = vpop.xlane.xlu0 %1097
        %v1099 = vmax.f32 %v945, %v947
        %1100 = vmax.xlane.f32.xlu0 %v1099
        %v1101 = vpop.xlane.xlu0 %1100
        %v1102 = vmax.f32 %v949, %v951
        %1103 = vmax.xlane.f32.xlu0 %v1102
        %v1104 = vpop.xlane.xlu0 %1103
        %v1105 = vmax.f32 %v955, %v957
        %1106 = vmax.xlane.f32.xlu0 %v1105
        %v1107 = vpop.xlane.xlu0 %1106
        %v1108 = vmax.f32 %v959, %v961
        %1109 = vmax.xlane.f32.xlu0 %v1108
        %v1110 = vpop.xlane.xlu0 %1109
        %v1111 = vmax.f32 %v965, %v967
        %1112 = vmax.xlane.f32.xlu0 %v1111
        %v1113 = vpop.xlane.xlu0 %1112
        %v1114 = vmax.f32 %v969, %v971
        %1115 = vmax.xlane.f32.xlu0 %v1114
        %v1116 = vpop.xlane.xlu0 %1115
        %v1117 = vmax.f32 %v975, %v977
        %1118 = vmax.xlane.f32.xlu0 %v1117
        %v1119 = vpop.xlane.xlu0 %1118
        %v1120 = vmax.f32 %v979, %v981
        %1121 = vmax.xlane.f32.xlu0 %v1120
        %v1122 = vpop.xlane.xlu0 %1121
        %v1123 = vmax.f32 %v985, %v987
        %1124 = vmax.xlane.f32.xlu0 %v1123
        %v1125 = vpop.xlane.xlu0 %1124
        %v1126 = vmax.f32 %v989, %v991
        %1127 = vmax.xlane.f32.xlu0 %v1126
        %v1128 = vpop.xlane.xlu0 %1127
        %v1129 = vmax.f32 %v995, %v997
        %1130 = vmax.xlane.f32.xlu0 %v1129
        %v1131 = vpop.xlane.xlu0 %1130
        %v1132 = vmax.f32 %v999, %v1001
        %1133 = vmax.xlane.f32.xlu0 %v1132
        %v1134 = vpop.xlane.xlu0 %1133
        %v1135 = vmax.f32 %v1005, %v1007
        %1136 = vmax.xlane.f32.xlu0 %v1135
        %v1137 = vpop.xlane.xlu0 %1136
        %v1138 = vmax.f32 %v1009, %v1011
        %1139 = vmax.xlane.f32.xlu0 %v1138
        %v1140 = vpop.xlane.xlu0 %1139
        %v1141 = vmax.f32 %v1013, %v1047
        %v1142 = vmax.f32 %v1014, %v1050
        %v1143 = vmax.f32 %v1015, %v1053
        %v1144 = vmax.f32 %v1016, %v1056
        %v1145 = vmax.f32 %v1017, %v1059
        %v1146 = vmax.f32 %v1018, %v1062
        %v1147 = vmax.f32 %v1019, %v1065
        %v1148 = vmax.f32 %v1020, %v1068
        %v1149 = vmax.f32 %v1021, %v1071
        %v1150 = vmax.f32 %v1022, %v1074
        %v1151 = vmax.f32 %v1023, %v1077
        %v1152 = vmax.f32 %v1024, %v1080
        %v1153 = vmax.f32 %v1025, %v1083
        %v1154 = vmax.f32 %v1026, %v1086
        %v1155 = vmax.f32 %v1027, %v1089
        %v1156 = vmax.f32 %v1028, %v1092
        %v1157 = vmax.f32 %v1029, %v1095
        %v1158 = vmax.f32 %v1030, %v1098
        %v1159 = vmax.f32 %v1031, %v1101
        %v1160 = vmax.f32 %v1032, %v1104
        %v1161 = vmax.f32 %v1033, %v1107
        %v1162 = vmax.f32 %v1034, %v1110
        %v1163 = vmax.f32 %v1035, %v1113
        %v1164 = vmax.f32 %v1036, %v1116
        %v1165 = vmax.f32 %v1037, %v1119
        %v1166 = vmax.f32 %v1038, %v1122
        %v1167 = vmax.f32 %v1039, %v1125
        %v1168 = vmax.f32 %v1040, %v1128
        %v1169 = vmax.f32 %v1041, %v1131
        %v1170 = vmax.f32 %v1042, %v1134
        %v1171 = vmax.f32 %v1043, %v1137
        %v1172 = vmax.f32 %v1044, %v1140
        %v1173 = vsub.f32 %v1013, %v1141
        %v1174 = vsub.f32 %v1014, %v1142
        %v1175 = vsub.f32 %v1015, %v1143
        %v1176 = vsub.f32 %v1016, %v1144
        %v1177 = vsub.f32 %v1017, %v1145
        %v1178 = vsub.f32 %v1018, %v1146
        %v1179 = vsub.f32 %v1019, %v1147
        %v1180 = vsub.f32 %v1020, %v1148
        %v1181 = vsub.f32 %v1021, %v1149
        %v1182 = vsub.f32 %v1022, %v1150
        %v1183 = vsub.f32 %v1023, %v1151
        %v1184 = vsub.f32 %v1024, %v1152
        %v1185 = vsub.f32 %v1025, %v1153
        %v1186 = vsub.f32 %v1026, %v1154
        %v1187 = vsub.f32 %v1027, %v1155
        %v1188 = vsub.f32 %v1028, %v1156
        %v1189 = vsub.f32 %v1029, %v1157
        %v1190 = vsub.f32 %v1030, %v1158
        %v1191 = vsub.f32 %v1031, %v1159
        %v1192 = vsub.f32 %v1032, %v1160
        %v1193 = vsub.f32 %v1033, %v1161
        %v1194 = vsub.f32 %v1034, %v1162
        %v1195 = vsub.f32 %v1035, %v1163
        %v1196 = vsub.f32 %v1036, %v1164
        %v1197 = vsub.f32 %v1037, %v1165
        %v1198 = vsub.f32 %v1038, %v1166
        %v1199 = vsub.f32 %v1039, %v1167
        %v1200 = vsub.f32 %v1040, %v1168
        %v1201 = vsub.f32 %v1041, %v1169
        %v1202 = vsub.f32 %v1042, %v1170
        %v1203 = vsub.f32 %v1043, %v1171
        %v1204 = vsub.f32 %v1044, %v1172
        %v1205 = vmul.f32 %v1173, 1.442695
        %v1206 = vpow.pop %v1205
        %v1207 = vmul.f32 %v1174, 1.442695
        %v1208 = vpow.pop %v1207
        %v1209 = vmul.f32 %v1175, 1.442695
        %v1210 = vpow.pop %v1209
        %v1211 = vmul.f32 %v1176, 1.442695
        %v1212 = vpow.pop %v1211
        %v1213 = vmul.f32 %v1177, 1.442695
        %v1214 = vpow.pop %v1213
        %v1215 = vmul.f32 %v1178, 1.442695
        %v1216 = vpow.pop %v1215
        %v1217 = vmul.f32 %v1179, 1.442695
        %v1218 = vpow.pop %v1217
        %v1219 = vmul.f32 %v1180, 1.442695
        %v1220 = vpow.pop %v1219
        %v1221 = vmul.f32 %v1181, 1.442695
        %v1222 = vpow.pop %v1221
        %v1223 = vmul.f32 %v1182, 1.442695
        %v1224 = vpow.pop %v1223
        %v1225 = vmul.f32 %v1183, 1.442695
        %v1226 = vpow.pop %v1225
        %v1227 = vmul.f32 %v1184, 1.442695
        %v1228 = vpow.pop %v1227
        %v1229 = vmul.f32 %v1185, 1.442695
        %v1230 = vpow.pop %v1229
        %v1231 = vmul.f32 %v1186, 1.442695
        %v1232 = vpow.pop %v1231
        %v1233 = vmul.f32 %v1187, 1.442695
        %v1234 = vpow.pop %v1233
        %v1235 = vmul.f32 %v1188, 1.442695
        %v1236 = vpow.pop %v1235
        %v1237 = vmul.f32 %v1189, 1.442695
        %v1238 = vpow.pop %v1237
        %v1239 = vmul.f32 %v1190, 1.442695
        %v1240 = vpow.pop %v1239
        %v1241 = vmul.f32 %v1191, 1.442695
        %v1242 = vpow.pop %v1241
        %v1243 = vmul.f32 %v1192, 1.442695
        %v1244 = vpow.pop %v1243
        %v1245 = vmul.f32 %v1193, 1.442695
        %v1246 = vpow.pop %v1245
        %v1247 = vmul.f32 %v1194, 1.442695
        %v1248 = vpow.pop %v1247
        %v1249 = vmul.f32 %v1195, 1.442695
        %v1250 = vpow.pop %v1249
        %v1251 = vmul.f32 %v1196, 1.442695
        %v1252 = vpow.pop %v1251
        %v1253 = vmul.f32 %v1197, 1.442695
        %v1254 = vpow.pop %v1253
        %v1255 = vmul.f32 %v1198, 1.442695
        %v1256 = vpow.pop %v1255
        %v1257 = vmul.f32 %v1199, 1.442695
        %v1258 = vpow.pop %v1257
        %v1259 = vmul.f32 %v1200, 1.442695
        %v1260 = vpow.pop %v1259
        %v1261 = vmul.f32 %v1201, 1.442695
        %v1262 = vpow.pop %v1261
        %v1263 = vmul.f32 %v1202, 1.442695
        %v1264 = vpow.pop %v1263
        %v1265 = vmul.f32 %v1203, 1.442695
        %v1266 = vpow.pop %v1265
        %v1267 = vmul.f32 %v1204, 1.442695
        %v1268 = vpow.pop %v1267
        %1270 = vset.pattern.permute.xlu0 0
        %1271 = vperm.xlu0 %1270, %v1141
        %v1272 = vpop.permute.xlu0 %1271
        %1275 = vset.pattern.permute.xlu0 0
        %1276 = vperm.xlu0 %1275, %v1142
        %v1277 = vpop.permute.xlu0 %1276
        %1280 = vset.pattern.permute.xlu0 0
        %1281 = vperm.xlu0 %1280, %v1143
        %v1282 = vpop.permute.xlu0 %1281
        %1285 = vset.pattern.permute.xlu0 0
        %1286 = vperm.xlu0 %1285, %v1144
        %v1287 = vpop.permute.xlu0 %1286
        %1290 = vset.pattern.permute.xlu0 0
        %1291 = vperm.xlu0 %1290, %v1145
        %v1292 = vpop.permute.xlu0 %1291
        %1295 = vset.pattern.permute.xlu0 0
        %1296 = vperm.xlu0 %1295, %v1146
        %v1297 = vpop.permute.xlu0 %1296
        %1300 = vset.pattern.permute.xlu0 0
        %1301 = vperm.xlu0 %1300, %v1147
        %v1302 = vpop.permute.xlu0 %1301
        %1305 = vset.pattern.permute.xlu0 0
        %1306 = vperm.xlu0 %1305, %v1148
        %v1307 = vpop.permute.xlu0 %1306
        %1310 = vset.pattern.permute.xlu0 0
        %1311 = vperm.xlu0 %1310, %v1149
        %v1312 = vpop.permute.xlu0 %1311
        %1315 = vset.pattern.permute.xlu0 0
        %1316 = vperm.xlu0 %1315, %v1150
        %v1317 = vpop.permute.xlu0 %1316
        %1320 = vset.pattern.permute.xlu0 0
        %1321 = vperm.xlu0 %1320, %v1151
        %v1322 = vpop.permute.xlu0 %1321
        %1325 = vset.pattern.permute.xlu0 0
        %1326 = vperm.xlu0 %1325, %v1152
        %v1327 = vpop.permute.xlu0 %1326
        %1330 = vset.pattern.permute.xlu0 0
        %1331 = vperm.xlu0 %1330, %v1153
        %v1332 = vpop.permute.xlu0 %1331
        %1335 = vset.pattern.permute.xlu0 0
        %1336 = vperm.xlu0 %1335, %v1154
        %v1337 = vpop.permute.xlu0 %1336
        %1340 = vset.pattern.permute.xlu0 0
        %1341 = vperm.xlu0 %1340, %v1155
        %v1342 = vpop.permute.xlu0 %1341
        %1345 = vset.pattern.permute.xlu0 0
        %1346 = vperm.xlu0 %1345, %v1156
        %v1347 = vpop.permute.xlu0 %1346
        %1350 = vset.pattern.permute.xlu0 0
        %1351 = vperm.xlu0 %1350, %v1157
        %v1352 = vpop.permute.xlu0 %1351
        %1355 = vset.pattern.permute.xlu0 0
        %1356 = vperm.xlu0 %1355, %v1158
        %v1357 = vpop.permute.xlu0 %1356
        %1360 = vset.pattern.permute.xlu0 0
        %1361 = vperm.xlu0 %1360, %v1159
        %v1362 = vpop.permute.xlu0 %1361
        %1365 = vset.pattern.permute.xlu0 0
        %1366 = vperm.xlu0 %1365, %v1160
        %v1367 = vpop.permute.xlu0 %1366
        %1370 = vset.pattern.permute.xlu0 0
        %1371 = vperm.xlu0 %1370, %v1161
        %v1372 = vpop.permute.xlu0 %1371
        %1375 = vset.pattern.permute.xlu0 0
        %1376 = vperm.xlu0 %1375, %v1162
        %v1377 = vpop.permute.xlu0 %1376
        %1380 = vset.pattern.permute.xlu0 0
        %1381 = vperm.xlu0 %1380, %v1163
        %v1382 = vpop.permute.xlu0 %1381
        %1385 = vset.pattern.permute.xlu0 0
        %1386 = vperm.xlu0 %1385, %v1164
        %v1387 = vpop.permute.xlu0 %1386
        %1390 = vset.pattern.permute.xlu0 0
        %1391 = vperm.xlu0 %1390, %v1165
        %v1392 = vpop.permute.xlu0 %1391
        %1395 = vset.pattern.permute.xlu0 0
        %1396 = vperm.xlu0 %1395, %v1166
        %v1397 = vpop.permute.xlu0 %1396
        %1400 = vset.pattern.permute.xlu0 0
        %1401 = vperm.xlu0 %1400, %v1167
        %v1402 = vpop.permute.xlu0 %1401
        %1405 = vset.pattern.permute.xlu0 0
        %1406 = vperm.xlu0 %1405, %v1168
        %v1407 = vpop.permute.xlu0 %1406
        %1410 = vset.pattern.permute.xlu0 0
        %1411 = vperm.xlu0 %1410, %v1169
        %v1412 = vpop.permute.xlu0 %1411
        %1415 = vset.pattern.permute.xlu0 0
        %1416 = vperm.xlu0 %1415, %v1170
        %v1417 = vpop.permute.xlu0 %1416
        %1420 = vset.pattern.permute.xlu0 0
        %1421 = vperm.xlu0 %1420, %v1171
        %v1422 = vpop.permute.xlu0 %1421
        %1425 = vset.pattern.permute.xlu0 0
        %1426 = vperm.xlu0 %1425, %v1172
        %v1427 = vpop.permute.xlu0 %1426
        %v1429 = vsub.f32 %v855, %v1272
        %v1430 = vsub.f32 %v857, %v1272
        %v1431 = vsub.f32 %v859, %v1277
        %v1432 = vsub.f32 %v861, %v1277
        %v1433 = vsub.f32 %v865, %v1282
        %v1434 = vsub.f32 %v867, %v1282
        %v1435 = vsub.f32 %v869, %v1287
        %v1436 = vsub.f32 %v871, %v1287
        %v1437 = vsub.f32 %v875, %v1292
        %v1438 = vsub.f32 %v877, %v1292
        %v1439 = vsub.f32 %v879, %v1297
        %v1440 = vsub.f32 %v881, %v1297
        %v1441 = vsub.f32 %v885, %v1302
        %v1442 = vsub.f32 %v887, %v1302
        %v1443 = vsub.f32 %v889, %v1307
        %v1444 = vsub.f32 %v891, %v1307
        %v1445 = vsub.f32 %v895, %v1312
        %v1446 = vsub.f32 %v897, %v1312
        %v1447 = vsub.f32 %v899, %v1317
        %v1448 = vsub.f32 %v901, %v1317
        %v1449 = vsub.f32 %v905, %v1322
        %v1450 = vsub.f32 %v907, %v1322
        %v1451 = vsub.f32 %v909, %v1327
        %v1452 = vsub.f32 %v911, %v1327
        %v1453 = vsub.f32 %v915, %v1332
        %v1454 = vsub.f32 %v917, %v1332
        %v1455 = vsub.f32 %v919, %v1337
        %v1456 = vsub.f32 %v921, %v1337
        %v1457 = vsub.f32 %v925, %v1342
        %v1458 = vsub.f32 %v927, %v1342
        %v1459 = vsub.f32 %v929, %v1347
        %v1460 = vsub.f32 %v931, %v1347
        %v1461 = vsub.f32 %v935, %v1352
        %v1462 = vsub.f32 %v937, %v1352
        %v1463 = vsub.f32 %v939, %v1357
        %v1464 = vsub.f32 %v941, %v1357
        %v1465 = vsub.f32 %v945, %v1362
        %v1466 = vsub.f32 %v947, %v1362
        %v1467 = vsub.f32 %v949, %v1367
        %v1468 = vsub.f32 %v951, %v1367
        %v1469 = vsub.f32 %v955, %v1372
        %v1470 = vsub.f32 %v957, %v1372
        %v1471 = vsub.f32 %v959, %v1377
        %v1472 = vsub.f32 %v961, %v1377
        %v1473 = vsub.f32 %v965, %v1382
        %v1474 = vsub.f32 %v967, %v1382
        %v1475 = vsub.f32 %v969, %v1387
        %v1476 = vsub.f32 %v971, %v1387
        %v1477 = vsub.f32 %v975, %v1392
        %v1478 = vsub.f32 %v977, %v1392
        %v1479 = vsub.f32 %v979, %v1397
        %v1480 = vsub.f32 %v981, %v1397
        %v1481 = vsub.f32 %v985, %v1402
        %v1482 = vsub.f32 %v987, %v1402
        %v1483 = vsub.f32 %v989, %v1407
        %v1484 = vsub.f32 %v991, %v1407
        %v1485 = vsub.f32 %v995, %v1412
        %v1486 = vsub.f32 %v997, %v1412
        %v1487 = vsub.f32 %v999, %v1417
        %v1488 = vsub.f32 %v1001, %v1417
        %v1489 = vsub.f32 %v1005, %v1422
        %v1490 = vsub.f32 %v1007, %v1422
        %v1491 = vsub.f32 %v1009, %v1427
        %v1492 = vsub.f32 %v1011, %v1427
        %v1493 = vmul.f32 %v1429, 1.442695
        %v1494 = vpow.pop %v1493
        %v1495 = vmul.f32 %v1430, 1.442695
        %v1496 = vpow.pop %v1495
        %v1497 = vmul.f32 %v1431, 1.442695
        %v1498 = vpow.pop %v1497
        %v1499 = vmul.f32 %v1432, 1.442695
        %v1500 = vpow.pop %v1499
        %v1501 = vmul.f32 %v1433, 1.442695
        %v1502 = vpow.pop %v1501
        %v1503 = vmul.f32 %v1434, 1.442695
        %v1504 = vpow.pop %v1503
        %v1505 = vmul.f32 %v1435, 1.442695
        %v1506 = vpow.pop %v1505
        %v1507 = vmul.f32 %v1436, 1.442695
        %v1508 = vpow.pop %v1507
        %v1509 = vmul.f32 %v1437, 1.442695
        %v1510 = vpow.pop %v1509
        %v1511 = vmul.f32 %v1438, 1.442695
        %v1512 = vpow.pop %v1511
        %v1513 = vmul.f32 %v1439, 1.442695
        %v1514 = vpow.pop %v1513
        %v1515 = vmul.f32 %v1440, 1.442695
        %v1516 = vpow.pop %v1515
        %v1517 = vmul.f32 %v1441, 1.442695
        %v1518 = vpow.pop %v1517
        %v1519 = vmul.f32 %v1442, 1.442695
        %v1520 = vpow.pop %v1519
        %v1521 = vmul.f32 %v1443, 1.442695
        %v1522 = vpow.pop %v1521
        %v1523 = vmul.f32 %v1444, 1.442695
        %v1524 = vpow.pop %v1523
        %v1525 = vmul.f32 %v1445, 1.442695
        %v1526 = vpow.pop %v1525
        %v1527 = vmul.f32 %v1446, 1.442695
        %v1528 = vpow.pop %v1527
        %v1529 = vmul.f32 %v1447, 1.442695
        %v1530 = vpow.pop %v1529
        %v1531 = vmul.f32 %v1448, 1.442695
        %v1532 = vpow.pop %v1531
        %v1533 = vmul.f32 %v1449, 1.442695
        %v1534 = vpow.pop %v1533
        %v1535 = vmul.f32 %v1450, 1.442695
        %v1536 = vpow.pop %v1535
        %v1537 = vmul.f32 %v1451, 1.442695
        %v1538 = vpow.pop %v1537
        %v1539 = vmul.f32 %v1452, 1.442695
        %v1540 = vpow.pop %v1539
        %v1541 = vmul.f32 %v1453, 1.442695
        %v1542 = vpow.pop %v1541
        %v1543 = vmul.f32 %v1454, 1.442695
        %v1544 = vpow.pop %v1543
        %v1545 = vmul.f32 %v1455, 1.442695
        %v1546 = vpow.pop %v1545
        %v1547 = vmul.f32 %v1456, 1.442695
        %v1548 = vpow.pop %v1547
        %v1549 = vmul.f32 %v1457, 1.442695
        %v1550 = vpow.pop %v1549
        %v1551 = vmul.f32 %v1458, 1.442695
        %v1552 = vpow.pop %v1551
        %v1553 = vmul.f32 %v1459, 1.442695
        %v1554 = vpow.pop %v1553
        %v1555 = vmul.f32 %v1460, 1.442695
        %v1556 = vpow.pop %v1555
        %v1557 = vmul.f32 %v1461, 1.442695
        %v1558 = vpow.pop %v1557
        %v1559 = vmul.f32 %v1462, 1.442695
        %v1560 = vpow.pop %v1559
        %v1561 = vmul.f32 %v1463, 1.442695
        %v1562 = vpow.pop %v1561
        %v1563 = vmul.f32 %v1464, 1.442695
        %v1564 = vpow.pop %v1563
        %v1565 = vmul.f32 %v1465, 1.442695
        %v1566 = vpow.pop %v1565
        %v1567 = vmul.f32 %v1466, 1.442695
        %v1568 = vpow.pop %v1567
        %v1569 = vmul.f32 %v1467, 1.442695
        %v1570 = vpow.pop %v1569
        %v1571 = vmul.f32 %v1468, 1.442695
        %v1572 = vpow.pop %v1571
        %v1573 = vmul.f32 %v1469, 1.442695
        %v1574 = vpow.pop %v1573
        %v1575 = vmul.f32 %v1470, 1.442695
        %v1576 = vpow.pop %v1575
        %v1577 = vmul.f32 %v1471, 1.442695
        %v1578 = vpow.pop %v1577
        %v1579 = vmul.f32 %v1472, 1.442695
        %v1580 = vpow.pop %v1579
        %v1581 = vmul.f32 %v1473, 1.442695
        %v1582 = vpow.pop %v1581
        %v1583 = vmul.f32 %v1474, 1.442695
        %v1584 = vpow.pop %v1583
        %v1585 = vmul.f32 %v1475, 1.442695
        %v1586 = vpow.pop %v1585
        %v1587 = vmul.f32 %v1476, 1.442695
        %v1588 = vpow.pop %v1587
        %v1589 = vmul.f32 %v1477, 1.442695
        %v1590 = vpow.pop %v1589
        %v1591 = vmul.f32 %v1478, 1.442695
        %v1592 = vpow.pop %v1591
        %v1593 = vmul.f32 %v1479, 1.442695
        %v1594 = vpow.pop %v1593
        %v1595 = vmul.f32 %v1480, 1.442695
        %v1596 = vpow.pop %v1595
        %v1597 = vmul.f32 %v1481, 1.442695
        %v1598 = vpow.pop %v1597
        %v1599 = vmul.f32 %v1482, 1.442695
        %v1600 = vpow.pop %v1599
        %v1601 = vmul.f32 %v1483, 1.442695
        %v1602 = vpow.pop %v1601
        %v1603 = vmul.f32 %v1484, 1.442695
        %v1604 = vpow.pop %v1603
        %v1605 = vmul.f32 %v1485, 1.442695
        %v1606 = vpow.pop %v1605
        %v1607 = vmul.f32 %v1486, 1.442695
        %v1608 = vpow.pop %v1607
        %v1609 = vmul.f32 %v1487, 1.442695
        %v1610 = vpow.pop %v1609
        %v1611 = vmul.f32 %v1488, 1.442695
        %v1612 = vpow.pop %v1611
        %v1613 = vmul.f32 %v1489, 1.442695
        %v1614 = vpow.pop %v1613
        %v1615 = vmul.f32 %v1490, 1.442695
        %v1616 = vpow.pop %v1615
        %v1617 = vmul.f32 %v1491, 1.442695
        %v1618 = vpow.pop %v1617
        %v1619 = vmul.f32 %v1492, 1.442695
        %v1620 = vpow.pop %v1619
        %v1621 = vld [vmem:[#allocation3] sm:$0xff]
        %v1622 = vld [vmem:[#allocation3 + $0x8] sm:$0xff]
        %v1623 = vld [vmem:[#allocation3 + $0x10] sm:$0xff]
        %v1624 = vld [vmem:[#allocation3 + $0x18] sm:$0xff]
        %v1625 = vld [vmem:[#allocation3 + $0x20] sm:$0xff]
        %v1626 = vld [vmem:[#allocation3 + $0x28] sm:$0xff]
        %v1627 = vld [vmem:[#allocation3 + $0x30] sm:$0xff]
        %v1628 = vld [vmem:[#allocation3 + $0x38] sm:$0xff]
        %v1629 = vld [vmem:[#allocation3 + $0x40] sm:$0xff]
        %v1630 = vld [vmem:[#allocation3 + $0x48] sm:$0xff]
        %v1631 = vld [vmem:[#allocation3 + $0x50] sm:$0xff]
        %v1632 = vld [vmem:[#allocation3 + $0x58] sm:$0xff]
        %v1633 = vld [vmem:[#allocation3 + $0x60] sm:$0xff]
        %v1634 = vld [vmem:[#allocation3 + $0x68] sm:$0xff]
        %v1635 = vld [vmem:[#allocation3 + $0x70] sm:$0xff]
        %v1636 = vld [vmem:[#allocation3 + $0x78] sm:$0xff]
        %v1637 = vld [vmem:[#allocation3 + $0x80] sm:$0xff]
        %v1638 = vld [vmem:[#allocation3 + $0x88] sm:$0xff]
        %v1639 = vld [vmem:[#allocation3 + $0x90] sm:$0xff]
        %v1640 = vld [vmem:[#allocation3 + $0x98] sm:$0xff]
        %v1641 = vld [vmem:[#allocation3 + $0xa0] sm:$0xff]
        %v1642 = vld [vmem:[#allocation3 + $0xa8] sm:$0xff]
        %v1643 = vld [vmem:[#allocation3 + $0xb0] sm:$0xff]
        %v1644 = vld [vmem:[#allocation3 + $0xb8] sm:$0xff]
        %v1645 = vld [vmem:[#allocation3 + $0xc0] sm:$0xff]
        %v1646 = vld [vmem:[#allocation3 + $0xc8] sm:$0xff]
        %v1647 = vld [vmem:[#allocation3 + $0xd0] sm:$0xff]
        %v1648 = vld [vmem:[#allocation3 + $0xd8] sm:$0xff]
        %v1649 = vld [vmem:[#allocation3 + $0xe0] sm:$0xff]
        %v1650 = vld [vmem:[#allocation3 + $0xe8] sm:$0xff]
        %v1651 = vld [vmem:[#allocation3 + $0xf0] sm:$0xff]
        %v1652 = vld [vmem:[#allocation3 + $0xf8] sm:$0xff]
        %v1653 = vmul.f32 %v1206, %v1621
        %v1654 = vmul.f32 %v1208, %v1622
        %v1655 = vmul.f32 %v1210, %v1623
        %v1656 = vmul.f32 %v1212, %v1624
        %v1657 = vmul.f32 %v1214, %v1625
        %v1658 = vmul.f32 %v1216, %v1626
        %v1659 = vmul.f32 %v1218, %v1627
        %v1660 = vmul.f32 %v1220, %v1628
        %v1661 = vmul.f32 %v1222, %v1629
        %v1662 = vmul.f32 %v1224, %v1630
        %v1663 = vmul.f32 %v1226, %v1631
        %v1664 = vmul.f32 %v1228, %v1632
        %v1665 = vmul.f32 %v1230, %v1633
        %v1666 = vmul.f32 %v1232, %v1634
        %v1667 = vmul.f32 %v1234, %v1635
        %v1668 = vmul.f32 %v1236, %v1636
        %v1669 = vmul.f32 %v1238, %v1637
        %v1670 = vmul.f32 %v1240, %v1638
        %v1671 = vmul.f32 %v1242, %v1639
        %v1672 = vmul.f32 %v1244, %v1640
        %v1673 = vmul.f32 %v1246, %v1641
        %v1674 = vmul.f32 %v1248, %v1642
        %v1675 = vmul.f32 %v1250, %v1643
        %v1676 = vmul.f32 %v1252, %v1644
        %v1677 = vmul.f32 %v1254, %v1645
        %v1678 = vmul.f32 %v1256, %v1646
        %v1679 = vmul.f32 %v1258, %v1647
        %v1680 = vmul.f32 %v1260, %v1648
        %v1681 = vmul.f32 %v1262, %v1649
        %v1682 = vmul.f32 %v1264, %v1650
        %v1683 = vmul.f32 %v1266, %v1651
        %v1684 = vmul.f32 %v1268, %v1652
        %v1685 = vadd.f32 %v1494, %v1496
        %1686 = vadd.xlane.f32.xlu0 %v1685
        %v1687 = vpop.xlane.xlu0 %1686
        %v1688 = vadd.f32 %v1498, %v1500
        %1689 = vadd.xlane.f32.xlu0 %v1688
        %v1690 = vpop.xlane.xlu0 %1689
        %v1691 = vadd.f32 %v1502, %v1504
        %1692 = vadd.xlane.f32.xlu0 %v1691
        %v1693 = vpop.xlane.xlu0 %1692
        %v1694 = vadd.f32 %v1506, %v1508
        %1695 = vadd.xlane.f32.xlu0 %v1694
        %v1696 = vpop.xlane.xlu0 %1695
        %v1697 = vadd.f32 %v1510, %v1512
        %1698 = vadd.xlane.f32.xlu0 %v1697
        %v1699 = vpop.xlane.xlu0 %1698
        %v1700 = vadd.f32 %v1514, %v1516
        %1701 = vadd.xlane.f32.xlu0 %v1700
        %v1702 = vpop.xlane.xlu0 %1701
        %v1703 = vadd.f32 %v1518, %v1520
        %1704 = vadd.xlane.f32.xlu0 %v1703
        %v1705 = vpop.xlane.xlu0 %1704
        %v1706 = vadd.f32 %v1522, %v1524
        %1707 = vadd.xlane.f32.xlu0 %v1706
        %v1708 = vpop.xlane.xlu0 %1707
        %v1709 = vadd.f32 %v1526, %v1528
        %1710 = vadd.xlane.f32.xlu0 %v1709
        %v1711 = vpop.xlane.xlu0 %1710
        %v1712 = vadd.f32 %v1530, %v1532
        %1713 = vadd.xlane.f32.xlu0 %v1712
        %v1714 = vpop.xlane.xlu0 %1713
        %v1715 = vadd.f32 %v1534, %v1536
        %1716 = vadd.xlane.f32.xlu0 %v1715
        %v1717 = vpop.xlane.xlu0 %1716
        %v1718 = vadd.f32 %v1538, %v1540
        %1719 = vadd.xlane.f32.xlu0 %v1718
        %v1720 = vpop.xlane.xlu0 %1719
        %v1721 = vadd.f32 %v1542, %v1544
        %1722 = vadd.xlane.f32.xlu0 %v1721
        %v1723 = vpop.xlane.xlu0 %1722
        %v1724 = vadd.f32 %v1546, %v1548
        %1725 = vadd.xlane.f32.xlu0 %v1724
        %v1726 = vpop.xlane.xlu0 %1725
        %v1727 = vadd.f32 %v1550, %v1552
        %1728 = vadd.xlane.f32.xlu0 %v1727
        %v1729 = vpop.xlane.xlu0 %1728
        %v1730 = vadd.f32 %v1554, %v1556
        %1731 = vadd.xlane.f32.xlu0 %v1730
        %v1732 = vpop.xlane.xlu0 %1731
        %v1733 = vadd.f32 %v1558, %v1560
        %1734 = vadd.xlane.f32.xlu0 %v1733
        %v1735 = vpop.xlane.xlu0 %1734
        %v1736 = vadd.f32 %v1562, %v1564
        %1737 = vadd.xlane.f32.xlu0 %v1736
        %v1738 = vpop.xlane.xlu0 %1737
        %v1739 = vadd.f32 %v1566, %v1568
        %1740 = vadd.xlane.f32.xlu0 %v1739
        %v1741 = vpop.xlane.xlu0 %1740
        %v1742 = vadd.f32 %v1570, %v1572
        %1743 = vadd.xlane.f32.xlu0 %v1742
        %v1744 = vpop.xlane.xlu0 %1743
        %v1745 = vadd.f32 %v1574, %v1576
        %1746 = vadd.xlane.f32.xlu0 %v1745
        %v1747 = vpop.xlane.xlu0 %1746
        %v1748 = vadd.f32 %v1578, %v1580
        %1749 = vadd.xlane.f32.xlu0 %v1748
        %v1750 = vpop.xlane.xlu0 %1749
        %v1751 = vadd.f32 %v1582, %v1584
        %1752 = vadd.xlane.f32.xlu0 %v1751
        %v1753 = vpop.xlane.xlu0 %1752
        %v1754 = vadd.f32 %v1586, %v1588
        %1755 = vadd.xlane.f32.xlu0 %v1754
        %v1756 = vpop.xlane.xlu0 %1755
        %v1757 = vadd.f32 %v1590, %v1592
        %1758 = vadd.xlane.f32.xlu0 %v1757
        %v1759 = vpop.xlane.xlu0 %1758
        %v1760 = vadd.f32 %v1594, %v1596
        %1761 = vadd.xlane.f32.xlu0 %v1760
        %v1762 = vpop.xlane.xlu0 %1761
        %v1763 = vadd.f32 %v1598, %v1600
        %1764 = vadd.xlane.f32.xlu0 %v1763
        %v1765 = vpop.xlane.xlu0 %1764
        %v1766 = vadd.f32 %v1602, %v1604
        %1767 = vadd.xlane.f32.xlu0 %v1766
        %v1768 = vpop.xlane.xlu0 %1767
        %v1769 = vadd.f32 %v1606, %v1608
        %1770 = vadd.xlane.f32.xlu0 %v1769
        %v1771 = vpop.xlane.xlu0 %1770
        %v1772 = vadd.f32 %v1610, %v1612
        %1773 = vadd.xlane.f32.xlu0 %v1772
        %v1774 = vpop.xlane.xlu0 %1773
        %v1775 = vadd.f32 %v1614, %v1616
        %1776 = vadd.xlane.f32.xlu0 %v1775
        %v1777 = vpop.xlane.xlu0 %1776
        %v1778 = vadd.f32 %v1618, %v1620
        %1779 = vadd.xlane.f32.xlu0 %v1778
        %v1780 = vpop.xlane.xlu0 %1779
        %v1781 = vadd.f32 %v1653, %v1687
        %v1782 = vadd.f32 %v1654, %v1690
        %v1783 = vadd.f32 %v1655, %v1693
        %v1784 = vadd.f32 %v1656, %v1696
        %v1785 = vadd.f32 %v1657, %v1699
        %v1786 = vadd.f32 %v1658, %v1702
        %v1787 = vadd.f32 %v1659, %v1705
        %v1788 = vadd.f32 %v1660, %v1708
        %v1789 = vadd.f32 %v1661, %v1711
        %v1790 = vadd.f32 %v1662, %v1714
        %v1791 = vadd.f32 %v1663, %v1717
        %v1792 = vadd.f32 %v1664, %v1720
        %v1793 = vadd.f32 %v1665, %v1723
        %v1794 = vadd.f32 %v1666, %v1726
        %v1795 = vadd.f32 %v1667, %v1729
        %v1796 = vadd.f32 %v1668, %v1732
        %v1797 = vadd.f32 %v1669, %v1735
        %v1798 = vadd.f32 %v1670, %v1738
        %v1799 = vadd.f32 %v1671, %v1741
        %v1800 = vadd.f32 %v1672, %v1744
        %v1801 = vadd.f32 %v1673, %v1747
        %v1802 = vadd.f32 %v1674, %v1750
        %v1803 = vadd.f32 %v1675, %v1753
        %v1804 = vadd.f32 %v1676, %v1756
        %v1805 = vadd.f32 %v1677, %v1759
        %v1806 = vadd.f32 %v1678, %v1762
        %v1807 = vadd.f32 %v1679, %v1765
        %v1808 = vadd.f32 %v1680, %v1768
        %v1809 = vadd.f32 %v1681, %v1771
        %v1810 = vadd.f32 %v1682, %v1774
        %v1811 = vadd.f32 %v1683, %v1777
        %v1812 = vadd.f32 %v1684, %v1780
        %vm1813 = vcmask 7168
        %1814 = vst.msk [vmem:[#allocation3] sm:$0xff] %vm1813, %v1781
        %1815 = vst.msk [vmem:[#allocation3 + $0x8] sm:$0xff] %vm1813, %v1782
        %1816 = vst.msk [vmem:[#allocation3 + $0x10] sm:$0xff] %vm1813, %v1783
        %1817 = vst.msk [vmem:[#allocation3 + $0x18] sm:$0xff] %vm1813, %v1784
        %1818 = vst.msk [vmem:[#allocation3 + $0x20] sm:$0xff] %vm1813, %v1785
        %1819 = vst.msk [vmem:[#allocation3 + $0x28] sm:$0xff] %vm1813, %v1786
        %1820 = vst.msk [vmem:[#allocation3 + $0x30] sm:$0xff] %vm1813, %v1787
        %1821 = vst.msk [vmem:[#allocation3 + $0x38] sm:$0xff] %vm1813, %v1788
        %1822 = vst.msk [vmem:[#allocation3 + $0x40] sm:$0xff] %vm1813, %v1789
        %1823 = vst.msk [vmem:[#allocation3 + $0x48] sm:$0xff] %vm1813, %v1790
        %1824 = vst.msk [vmem:[#allocation3 + $0x50] sm:$0xff] %vm1813, %v1791
        %1825 = vst.msk [vmem:[#allocation3 + $0x58] sm:$0xff] %vm1813, %v1792
        %1826 = vst.msk [vmem:[#allocation3 + $0x60] sm:$0xff] %vm1813, %v1793
        %1827 = vst.msk [vmem:[#allocation3 + $0x68] sm:$0xff] %vm1813, %v1794
        %1828 = vst.msk [vmem:[#allocation3 + $0x70] sm:$0xff] %vm1813, %v1795
        %1829 = vst.msk [vmem:[#allocation3 + $0x78] sm:$0xff] %vm1813, %v1796
        %1830 = vst.msk [vmem:[#allocation3 + $0x80] sm:$0xff] %vm1813, %v1797
        %1831 = vst.msk [vmem:[#allocation3 + $0x88] sm:$0xff] %vm1813, %v1798
        %1832 = vst.msk [vmem:[#allocation3 + $0x90] sm:$0xff] %vm1813, %v1799
        %1833 = vst.msk [vmem:[#allocation3 + $0x98] sm:$0xff] %vm1813, %v1800
        %1834 = vst.msk [vmem:[#allocation3 + $0xa0] sm:$0xff] %vm1813, %v1801
        %1835 = vst.msk [vmem:[#allocation3 + $0xa8] sm:$0xff] %vm1813, %v1802
        %1836 = vst.msk [vmem:[#allocation3 + $0xb0] sm:$0xff] %vm1813, %v1803
        %1837 = vst.msk [vmem:[#allocation3 + $0xb8] sm:$0xff] %vm1813, %v1804
        %1838 = vst.msk [vmem:[#allocation3 + $0xc0] sm:$0xff] %vm1813, %v1805
        %1839 = vst.msk [vmem:[#allocation3 + $0xc8] sm:$0xff] %vm1813, %v1806
        %1840 = vst.msk [vmem:[#allocation3 + $0xd0] sm:$0xff] %vm1813, %v1807
        %1841 = vst.msk [vmem:[#allocation3 + $0xd8] sm:$0xff] %vm1813, %v1808
        %1842 = vst.msk [vmem:[#allocation3 + $0xe0] sm:$0xff] %vm1813, %v1809
        %1843 = vst.msk [vmem:[#allocation3 + $0xe8] sm:$0xff] %vm1813, %v1810
        %1844 = vst.msk [vmem:[#allocation3 + $0xf0] sm:$0xff] %vm1813, %v1811
        %1845 = vst.msk [vmem:[#allocation3 + $0xf8] sm:$0xff] %vm1813, %v1812
        %v1846 = vld [vmem:[%s331] sm:$0xff]
        %v1847 = vld [vmem:[%s331 + $0x8] sm:$0xff]
        %v1848 = vld [vmem:[%s331 + $0x10] sm:$0xff]
        %v1849 = vld [vmem:[%s331 + $0x18] sm:$0xff]
        %v1850 = vld [vmem:[%s331 + $0x20] sm:$0xff]
        %v1851 = vld [vmem:[%s331 + $0x28] sm:$0xff]
        %v1852 = vld [vmem:[%s331 + $0x30] sm:$0xff]
        %v1853 = vld [vmem:[%s331 + $0x38] sm:$0xff]
        %v1854 = vld [vmem:[%s331 + $0x40] sm:$0xff]
        %v1855 = vld [vmem:[%s331 + $0x48] sm:$0xff]
        %v1856 = vld [vmem:[%s331 + $0x50] sm:$0xff]
        %v1857 = vld [vmem:[%s331 + $0x58] sm:$0xff]
        %v1858 = vld [vmem:[%s331 + $0x60] sm:$0xff]
        %v1859 = vld [vmem:[%s331 + $0x68] sm:$0xff]
        %v1860 = vld [vmem:[%s331 + $0x70] sm:$0xff]
        %v1861 = vld [vmem:[%s331 + $0x78] sm:$0xff]
        %v1862 = vld [vmem:[%s331 + $0x80] sm:$0xff]
        %v1863 = vld [vmem:[%s331 + $0x88] sm:$0xff]
        %v1864 = vld [vmem:[%s331 + $0x90] sm:$0xff]
        %v1865 = vld [vmem:[%s331 + $0x98] sm:$0xff]
        %v1866 = vld [vmem:[%s331 + $0xa0] sm:$0xff]
        %v1867 = vld [vmem:[%s331 + $0xa8] sm:$0xff]
        %v1868 = vld [vmem:[%s331 + $0xb0] sm:$0xff]
        %v1869 = vld [vmem:[%s331 + $0xb8] sm:$0xff]
        %v1870 = vld [vmem:[%s331 + $0xc0] sm:$0xff]
        %v1871 = vld [vmem:[%s331 + $0xc8] sm:$0xff]
        %v1872 = vld [vmem:[%s331 + $0xd0] sm:$0xff]
        %v1873 = vld [vmem:[%s331 + $0xd8] sm:$0xff]
        %v1874 = vld [vmem:[%s331 + $0xe0] sm:$0xff]
        %v1875 = vld [vmem:[%s331 + $0xe8] sm:$0xff]
        %v1876 = vld [vmem:[%s331 + $0xf0] sm:$0xff]
        %v1877 = vld [vmem:[%s331 + $0xf8] sm:$0xff]
        %1879 = vset.pattern.permute.xlu0 0
        %1880 = vperm.xlu0 %1879, %v1206
        %v1881 = vpop.permute.xlu0 %1880
        %1884 = vset.pattern.permute.xlu0 0
        %1885 = vperm.xlu0 %1884, %v1208
        %v1886 = vpop.permute.xlu0 %1885
        %1889 = vset.pattern.permute.xlu0 0
        %1890 = vperm.xlu0 %1889, %v1210
        %v1891 = vpop.permute.xlu0 %1890
        %1894 = vset.pattern.permute.xlu0 0
        %1895 = vperm.xlu0 %1894, %v1212
        %v1896 = vpop.permute.xlu0 %1895
        %1899 = vset.pattern.permute.xlu0 0
        %1900 = vperm.xlu0 %1899, %v1214
        %v1901 = vpop.permute.xlu0 %1900
        %1904 = vset.pattern.permute.xlu0 0
        %1905 = vperm.xlu0 %1904, %v1216
        %v1906 = vpop.permute.xlu0 %1905
        %1909 = vset.pattern.permute.xlu0 0
        %1910 = vperm.xlu0 %1909, %v1218
        %v1911 = vpop.permute.xlu0 %1910
        %1914 = vset.pattern.permute.xlu0 0
        %1915 = vperm.xlu0 %1914, %v1220
        %v1916 = vpop.permute.xlu0 %1915
        %1919 = vset.pattern.permute.xlu0 0
        %1920 = vperm.xlu0 %1919, %v1222
        %v1921 = vpop.permute.xlu0 %1920
        %1924 = vset.pattern.permute.xlu0 0
        %1925 = vperm.xlu0 %1924, %v1224
        %v1926 = vpop.permute.xlu0 %1925
        %1929 = vset.pattern.permute.xlu0 0
        %1930 = vperm.xlu0 %1929, %v1226
        %v1931 = vpop.permute.xlu0 %1930
        %1934 = vset.pattern.permute.xlu0 0
        %1935 = vperm.xlu0 %1934, %v1228
        %v1936 = vpop.permute.xlu0 %1935
        %1939 = vset.pattern.permute.xlu0 0
        %1940 = vperm.xlu0 %1939, %v1230
        %v1941 = vpop.permute.xlu0 %1940
        %1944 = vset.pattern.permute.xlu0 0
        %1945 = vperm.xlu0 %1944, %v1232
        %v1946 = vpop.permute.xlu0 %1945
        %1949 = vset.pattern.permute.xlu0 0
        %1950 = vperm.xlu0 %1949, %v1234
        %v1951 = vpop.permute.xlu0 %1950
        %1954 = vset.pattern.permute.xlu0 0
        %1955 = vperm.xlu0 %1954, %v1236
        %v1956 = vpop.permute.xlu0 %1955
        %1959 = vset.pattern.permute.xlu0 0
        %1960 = vperm.xlu0 %1959, %v1238
        %v1961 = vpop.permute.xlu0 %1960
        %1964 = vset.pattern.permute.xlu0 0
        %1965 = vperm.xlu0 %1964, %v1240
        %v1966 = vpop.permute.xlu0 %1965
        %1969 = vset.pattern.permute.xlu0 0
        %1970 = vperm.xlu0 %1969, %v1242
        %v1971 = vpop.permute.xlu0 %1970
        %1974 = vset.pattern.permute.xlu0 0
        %1975 = vperm.xlu0 %1974, %v1244
        %v1976 = vpop.permute.xlu0 %1975
        %1979 = vset.pattern.permute.xlu0 0
        %1980 = vperm.xlu0 %1979, %v1246
        %v1981 = vpop.permute.xlu0 %1980
        %1984 = vset.pattern.permute.xlu0 0
        %1985 = vperm.xlu0 %1984, %v1248
        %v1986 = vpop.permute.xlu0 %1985
        %1989 = vset.pattern.permute.xlu0 0
        %1990 = vperm.xlu0 %1989, %v1250
        %v1991 = vpop.permute.xlu0 %1990
        %1994 = vset.pattern.permute.xlu0 0
        %1995 = vperm.xlu0 %1994, %v1252
        %v1996 = vpop.permute.xlu0 %1995
        %1999 = vset.pattern.permute.xlu0 0
        %2000 = vperm.xlu0 %1999, %v1254
        %v2001 = vpop.permute.xlu0 %2000
        %2004 = vset.pattern.permute.xlu0 0
        %2005 = vperm.xlu0 %2004, %v1256
        %v2006 = vpop.permute.xlu0 %2005
        %2009 = vset.pattern.permute.xlu0 0
        %2010 = vperm.xlu0 %2009, %v1258
        %v2011 = vpop.permute.xlu0 %2010
        %2014 = vset.pattern.permute.xlu0 0
        %2015 = vperm.xlu0 %2014, %v1260
        %v2016 = vpop.permute.xlu0 %2015
        %2019 = vset.pattern.permute.xlu0 0
        %2020 = vperm.xlu0 %2019, %v1262
        %v2021 = vpop.permute.xlu0 %2020
        %2024 = vset.pattern.permute.xlu0 0
        %2025 = vperm.xlu0 %2024, %v1264
        %v2026 = vpop.permute.xlu0 %2025
        %2029 = vset.pattern.permute.xlu0 0
        %2030 = vperm.xlu0 %2029, %v1266
        %v2031 = vpop.permute.xlu0 %2030
        %2034 = vset.pattern.permute.xlu0 0
        %2035 = vperm.xlu0 %2034, %v1268
        %v2036 = vpop.permute.xlu0 %2035
        %v2038 = vmul.f32 %v1881, %v1846
        %v2039 = vmul.f32 %v1886, %v1847
        %v2040 = vmul.f32 %v1891, %v1848
        %v2041 = vmul.f32 %v1896, %v1849
        %v2042 = vmul.f32 %v1901, %v1850
        %v2043 = vmul.f32 %v1906, %v1851
        %v2044 = vmul.f32 %v1911, %v1852
        %v2045 = vmul.f32 %v1916, %v1853
        %v2046 = vmul.f32 %v1921, %v1854
        %v2047 = vmul.f32 %v1926, %v1855
        %v2048 = vmul.f32 %v1931, %v1856
        %v2049 = vmul.f32 %v1936, %v1857
        %v2050 = vmul.f32 %v1941, %v1858
        %v2051 = vmul.f32 %v1946, %v1859
        %v2052 = vmul.f32 %v1951, %v1860
        %v2053 = vmul.f32 %v1956, %v1861
        %v2054 = vmul.f32 %v1961, %v1862
        %v2055 = vmul.f32 %v1966, %v1863
        %v2056 = vmul.f32 %v1971, %v1864
        %v2057 = vmul.f32 %v1976, %v1865
        %v2058 = vmul.f32 %v1981, %v1866
        %v2059 = vmul.f32 %v1986, %v1867
        %v2060 = vmul.f32 %v1991, %v1868
        %v2061 = vmul.f32 %v1996, %v1869
        %v2062 = vmul.f32 %v2001, %v1870
        %v2063 = vmul.f32 %v2006, %v1871
        %v2064 = vmul.f32 %v2011, %v1872
        %v2065 = vmul.f32 %v2016, %v1873
        %v2066 = vmul.f32 %v2021, %v1874
        %v2067 = vmul.f32 %v2026, %v1875
        %v2068 = vmul.f32 %v2031, %v1876
        %v2069 = vmul.f32 %v2036, %v1877
        %v2070 = vpack.c.bf16 %v1498, %v1494
        %v2071 = vpack.c.bf16 %v1500, %v1496
        %v2072 = vpack.c.bf16 %v1506, %v1502
        %v2073 = vpack.c.bf16 %v1508, %v1504
        %v2074 = vpack.c.bf16 %v1514, %v1510
        %v2075 = vpack.c.bf16 %v1516, %v1512
        %v2076 = vpack.c.bf16 %v1522, %v1518
        %v2077 = vpack.c.bf16 %v1524, %v1520
        %v2078 = vpack.c.bf16 %v1530, %v1526
        %v2079 = vpack.c.bf16 %v1532, %v1528
        %v2080 = vpack.c.bf16 %v1538, %v1534
        %v2081 = vpack.c.bf16 %v1540, %v1536
        %v2082 = vpack.c.bf16 %v1546, %v1542
        %v2083 = vpack.c.bf16 %v1548, %v1544
        %v2084 = vpack.c.bf16 %v1554, %v1550
        %v2085 = vpack.c.bf16 %v1556, %v1552
        %v2086 = vpack.c.bf16 %v1562, %v1558
        %v2087 = vpack.c.bf16 %v1564, %v1560
        %v2088 = vpack.c.bf16 %v1570, %v1566
        %v2089 = vpack.c.bf16 %v1572, %v1568
        %v2090 = vpack.c.bf16 %v1578, %v1574
        %v2091 = vpack.c.bf16 %v1580, %v1576
        %v2092 = vpack.c.bf16 %v1586, %v1582
        %v2093 = vpack.c.bf16 %v1588, %v1584
        %v2094 = vpack.c.bf16 %v1594, %v1590
        %v2095 = vpack.c.bf16 %v1596, %v1592
        %v2096 = vpack.c.bf16 %v1602, %v1598
        %v2097 = vpack.c.bf16 %v1604, %v1600
        %v2098 = vpack.c.bf16 %v1610, %v1606
        %v2099 = vpack.c.bf16 %v1612, %v1608
        %v2100 = vpack.c.bf16 %v1618, %v1614
        %v2101 = vpack.c.bf16 %v1620, %v1616
        %v2134 = vunpack.c.l.b16 %v499
        %v2135 = vunpack.c.l.b16 %v500
        %v2136 = vunpack.c.l.b16 %v501
        %v2137 = vunpack.c.l.b16 %v502
        %v2138 = vunpack.c.l.b16 %v503
        %v2139 = vunpack.c.l.b16 %v504
        %v2140 = vunpack.c.l.b16 %v505
        %v2141 = vunpack.c.l.b16 %v506
        %v2142 = vunpack.c.l.b16 %v507
        %v2143 = vunpack.c.l.b16 %v508
        %v2144 = vunpack.c.l.b16 %v509
        %v2145 = vunpack.c.l.b16 %v510
        %v2146 = vunpack.c.l.b16 %v511
        %v2147 = vunpack.c.l.b16 %v512
        %v2148 = vunpack.c.l.b16 %v513
        %v2149 = vunpack.c.l.b16 %v514
        %v2150 = vunpack.c.l.b16 %v515
        %v2151 = vunpack.c.l.b16 %v516
        %v2152 = vunpack.c.l.b16 %v517
        %v2153 = vunpack.c.l.b16 %v518
        %v2154 = vunpack.c.l.b16 %v519
        %v2155 = vunpack.c.l.b16 %v520
        %v2156 = vunpack.c.l.b16 %v521
        %v2157 = vunpack.c.l.b16 %v522
        %v2158 = vunpack.c.l.b16 %v523
        %v2159 = vunpack.c.l.b16 %v524
        %v2160 = vunpack.c.l.b16 %v525
        %v2161 = vunpack.c.l.b16 %v526
        %v2162 = vunpack.c.l.b16 %v527
        %v2163 = vunpack.c.l.b16 %v528
        %v2164 = vunpack.c.l.b16 %v529
        %v2165 = vunpack.c.l.b16 %v530
        %v2166 = vpack.c.b16 %v2135, %v2134
        %v2167 = vpack.c.b16 %v2137, %v2136
        %v2168 = vpack.c.b16 %v2139, %v2138
        %v2169 = vpack.c.b16 %v2141, %v2140
        %v2170 = vpack.c.b16 %v2143, %v2142
        %v2171 = vpack.c.b16 %v2145, %v2144
        %v2172 = vpack.c.b16 %v2147, %v2146
        %v2173 = vpack.c.b16 %v2149, %v2148
        %v2174 = vpack.c.b16 %v2151, %v2150
        %v2175 = vpack.c.b16 %v2153, %v2152
        %v2176 = vpack.c.b16 %v2155, %v2154
        %v2177 = vpack.c.b16 %v2157, %v2156
        %v2178 = vpack.c.b16 %v2159, %v2158
        %v2179 = vpack.c.b16 %v2161, %v2160
        %v2180 = vpack.c.b16 %v2163, %v2162
        %v2181 = vpack.c.b16 %v2165, %v2164
        %2198 = vmatprep.subr.bf16.mxu0 0
        %2199 = vmatpush1.bf16.msra.mxu0 %v2166
        %2200 = vmatprep.subr.bf16.mxu0 0
        %2201 = vmatpush1.bf16.msra.mxu0 %v2167
        %2202 = vmatprep.subr.bf16.mxu0 0
        %2203 = vmatpush1.bf16.msra.mxu0 %v2168
        %2204 = vmatprep.subr.bf16.mxu0 0
        %2205 = vmatpush1.bf16.msra.mxu0 %v2169
        %2206 = vmatprep.subr.bf16.mxu0 0
        %2207 = vmatpush1.bf16.msra.mxu0 %v2170
        %2208 = vmatprep.subr.bf16.mxu0 0
        %2209 = vmatpush1.bf16.msra.mxu0 %v2171
        %2210 = vmatprep.subr.bf16.mxu0 0
        %2211 = vmatpush1.bf16.msra.mxu0 %v2172
        %2212 = vmatprep.subr.bf16.mxu0 0
        %2213 = vmatpush1.bf16.msra.mxu0 %v2173
        %2214 = vmatprep.subr.bf16.mxu0 0
        %2215 = vmatpush1.bf16.msra.mxu0 %v2174
        %2216 = vmatprep.subr.bf16.mxu0 0
        %2217 = vmatpush1.bf16.msra.mxu0 %v2175
        %2218 = vmatprep.subr.bf16.mxu0 0
        %2219 = vmatpush1.bf16.msra.mxu0 %v2176
        %2220 = vmatprep.subr.bf16.mxu0 0
        %2221 = vmatpush1.bf16.msra.mxu0 %v2177
        %2222 = vmatprep.subr.bf16.mxu0 0
        %2223 = vmatpush1.bf16.msra.mxu0 %v2178
        %2224 = vmatprep.subr.bf16.mxu0 0
        %2225 = vmatpush1.bf16.msra.mxu0 %v2179
        %2226 = vmatprep.subr.bf16.mxu0 0
        %2227 = vmatpush1.bf16.msra.mxu0 %v2180
        %2228 = vmatprep.subr.bf16.mxu0 0
        %2229 = vmatpush1.bf16.msra.mxu0 %v2181
        %2230 = vmatprep.mubr.bf16.mxu0 %v2071
        %2231 = vmatmul.mubr.bf16.gmra.mrb[0].mxu0 %v2070
        %v2232 = vpop.f32.mrb[0].mxu0
        %v2233 = vadd.f32 0.0, %v2232
        %v2234 = vpop.f32.mrb[0].mxu0
        %v2235 = vpop.f32.mrb[0].mxu0
        %v2236 = vadd.f32 0.0, %v2235
        %v2237 = vpop.f32.mrb[0].mxu0
        %2238 = vmatprep.mubr.bf16.mxu0 %v2073
        %2239 = vmatmul.mubr.bf16.gmra.mrb[0].mxu0 %v2072
        %v2240 = vpop.f32.mrb[0].mxu0
        %v2241 = vadd.f32 0.0, %v2240
        %v2242 = vpop.f32.mrb[0].mxu0
        %v2243 = vpop.f32.mrb[0].mxu0
        %v2244 = vadd.f32 0.0, %v2243
        %v2245 = vpop.f32.mrb[0].mxu0
        %2246 = vmatprep.mubr.bf16.mxu0 %v2075
        %2247 = vmatmul.mubr.bf16.gmra.mrb[0].mxu0 %v2074
        %v2248 = vpop.f32.mrb[0].mxu0
        %v2249 = vadd.f32 0.0, %v2248
        %v2250 = vpop.f32.mrb[0].mxu0
        %v2251 = vpop.f32.mrb[0].mxu0
        %v2252 = vadd.f32 0.0, %v2251
        %v2253 = vpop.f32.mrb[0].mxu0
        %2254 = vmatprep.mubr.bf16.mxu0 %v2077
        %2255 = vmatmul.mubr.bf16.gmra.mrb[0].mxu0 %v2076
        %v2256 = vpop.f32.mrb[0].mxu0
        %v2257 = vadd.f32 0.0, %v2256
        %v2258 = vpop.f32.mrb[0].mxu0
        %v2259 = vpop.f32.mrb[0].mxu0
        %v2260 = vadd.f32 0.0, %v2259
        %v2261 = vpop.f32.mrb[0].mxu0
        %2262 = vmatprep.mubr.bf16.mxu0 %v2079
        %2263 = vmatmul.mubr.bf16.gmra.mrb[0].mxu0 %v2078
        %v2264 = vpop.f32.mrb[0].mxu0
        %v2265 = vadd.f32 0.0, %v2264
        %v2266 = vpop.f32.mrb[0].mxu0
        %v2267 = vpop.f32.mrb[0].mxu0
        %v2268 = vadd.f32 0.0, %v2267
        %v2269 = vpop.f32.mrb[0].mxu0
        %2270 = vmatprep.mubr.bf16.mxu0 %v2081
        %2271 = vmatmul.mubr.bf16.gmra.mrb[0].mxu0 %v2080
        %v2272 = vpop.f32.mrb[0].mxu0
        %v2273 = vadd.f32 0.0, %v2272
        %v2274 = vpop.f32.mrb[0].mxu0
        %v2275 = vpop.f32.mrb[0].mxu0
        %v2276 = vadd.f32 0.0, %v2275
        %v2277 = vpop.f32.mrb[0].mxu0
        %2278 = vmatprep.mubr.bf16.mxu0 %v2083
        %2279 = vmatmul.mubr.bf16.gmra.mrb[0].mxu0 %v2082
        %v2280 = vpop.f32.mrb[0].mxu0
        %v2281 = vadd.f32 0.0, %v2280
        %v2282 = vpop.f32.mrb[0].mxu0
        %v2283 = vpop.f32.mrb[0].mxu0
        %v2284 = vadd.f32 0.0, %v2283
        %v2285 = vpop.f32.mrb[0].mxu0
        %2286 = vmatprep.mubr.bf16.mxu0 %v2085
        %2287 = vmatmul.mubr.bf16.gmra.mrb[0].mxu0 %v2084
        %v2288 = vpop.f32.mrb[0].mxu0
        %v2289 = vadd.f32 0.0, %v2288
        %v2290 = vpop.f32.mrb[0].mxu0
        %v2291 = vpop.f32.mrb[0].mxu0
        %v2292 = vadd.f32 0.0, %v2291
        %v2293 = vpop.f32.mrb[0].mxu0
        %2294 = vmatprep.mubr.bf16.mxu0 %v2087
        %2295 = vmatmul.mubr.bf16.gmra.mrb[0].mxu0 %v2086
        %v2296 = vpop.f32.mrb[0].mxu0
        %v2297 = vadd.f32 0.0, %v2296
        %v2298 = vpop.f32.mrb[0].mxu0
        %v2299 = vpop.f32.mrb[0].mxu0
        %v2300 = vadd.f32 0.0, %v2299
        %v2301 = vpop.f32.mrb[0].mxu0
        %2302 = vmatprep.mubr.bf16.mxu0 %v2089
        %2303 = vmatmul.mubr.bf16.gmra.mrb[0].mxu0 %v2088
        %v2304 = vpop.f32.mrb[0].mxu0
        %v2305 = vadd.f32 0.0, %v2304
        %v2306 = vpop.f32.mrb[0].mxu0
        %v2307 = vpop.f32.mrb[0].mxu0
        %v2308 = vadd.f32 0.0, %v2307
        %v2309 = vpop.f32.mrb[0].mxu0
        %2310 = vmatprep.mubr.bf16.mxu0 %v2091
        %2311 = vmatmul.mubr.bf16.gmra.mrb[0].mxu0 %v2090
        %v2312 = vpop.f32.mrb[0].mxu0
        %v2313 = vadd.f32 0.0, %v2312
        %v2314 = vpop.f32.mrb[0].mxu0
        %v2315 = vpop.f32.mrb[0].mxu0
        %v2316 = vadd.f32 0.0, %v2315
        %v2317 = vpop.f32.mrb[0].mxu0
        %2318 = vmatprep.mubr.bf16.mxu0 %v2093
        %2319 = vmatmul.mubr.bf16.gmra.mrb[0].mxu0 %v2092
        %v2320 = vpop.f32.mrb[0].mxu0
        %v2321 = vadd.f32 0.0, %v2320
        %v2322 = vpop.f32.mrb[0].mxu0
        %v2323 = vpop.f32.mrb[0].mxu0
        %v2324 = vadd.f32 0.0, %v2323
        %v2325 = vpop.f32.mrb[0].mxu0
        %2326 = vmatprep.mubr.bf16.mxu0 %v2095
        %2327 = vmatmul.mubr.bf16.gmra.mrb[0].mxu0 %v2094
        %v2328 = vpop.f32.mrb[0].mxu0
        %v2329 = vadd.f32 0.0, %v2328
        %v2330 = vpop.f32.mrb[0].mxu0
        %v2331 = vpop.f32.mrb[0].mxu0
        %v2332 = vadd.f32 0.0, %v2331
        %v2333 = vpop.f32.mrb[0].mxu0
        %2334 = vmatprep.mubr.bf16.mxu0 %v2097
        %2335 = vmatmul.mubr.bf16.gmra.mrb[0].mxu0 %v2096
        %v2336 = vpop.f32.mrb[0].mxu0
        %v2337 = vadd.f32 0.0, %v2336
        %v2338 = vpop.f32.mrb[0].mxu0
        %v2339 = vpop.f32.mrb[0].mxu0
        %v2340 = vadd.f32 0.0, %v2339
        %v2341 = vpop.f32.mrb[0].mxu0
        %2342 = vmatprep.mubr.bf16.mxu0 %v2099
        %2343 = vmatmul.mubr.bf16.gmra.mrb[0].mxu0 %v2098
        %v2344 = vpop.f32.mrb[0].mxu0
        %v2345 = vadd.f32 0.0, %v2344
        %v2346 = vpop.f32.mrb[0].mxu0
        %v2347 = vpop.f32.mrb[0].mxu0
        %v2348 = vadd.f32 0.0, %v2347
        %v2349 = vpop.f32.mrb[0].mxu0
        %2350 = vmatprep.mubr.bf16.mxu0 %v2101
        %2351 = vmatmul.mubr.bf16.gmra.mrb[0].mxu0 %v2100
        %v2352 = vpop.f32.mrb[0].mxu0
        %v2353 = vadd.f32 0.0, %v2352
        %v2354 = vpop.f32.mrb[0].mxu0
        %v2355 = vpop.f32.mrb[0].mxu0
        %v2356 = vadd.f32 0.0, %v2355
        %v2357 = vpop.f32.mrb[0].mxu0
        %2358 = vdwg.mxu0
        %v2359 = vadd.f32 %v2038, %v2233
        %v2360 = vadd.f32 %v2039, %v2236
        %v2361 = vadd.f32 %v2040, %v2241
        %v2362 = vadd.f32 %v2041, %v2244
        %v2363 = vadd.f32 %v2042, %v2249
        %v2364 = vadd.f32 %v2043, %v2252
        %v2365 = vadd.f32 %v2044, %v2257
        %v2366 = vadd.f32 %v2045, %v2260
        %v2367 = vadd.f32 %v2046, %v2265
        %v2368 = vadd.f32 %v2047, %v2268
        %v2369 = vadd.f32 %v2048, %v2273
        %v2370 = vadd.f32 %v2049, %v2276
        %v2371 = vadd.f32 %v2050, %v2281
        %v2372 = vadd.f32 %v2051, %v2284
        %v2373 = vadd.f32 %v2052, %v2289
        %v2374 = vadd.f32 %v2053, %v2292
        %v2375 = vadd.f32 %v2054, %v2297
        %v2376 = vadd.f32 %v2055, %v2300
        %v2377 = vadd.f32 %v2056, %v2305
        %v2378 = vadd.f32 %v2057, %v2308
        %v2379 = vadd.f32 %v2058, %v2313
        %v2380 = vadd.f32 %v2059, %v2316
        %v2381 = vadd.f32 %v2060, %v2321
        %v2382 = vadd.f32 %v2061, %v2324
        %v2383 = vadd.f32 %v2062, %v2329
        %v2384 = vadd.f32 %v2063, %v2332
        %v2385 = vadd.f32 %v2064, %v2337
        %v2386 = vadd.f32 %v2065, %v2340
        %v2387 = vadd.f32 %v2066, %v2345
        %v2388 = vadd.f32 %v2067, %v2348
        %v2389 = vadd.f32 %v2068, %v2353
        %v2390 = vadd.f32 %v2069, %v2356
        %2391 = vst [vmem:[%s331] sm:$0xff] %v2359
        %2392 = vst [vmem:[%s331 + $0x8] sm:$0xff] %v2360
        %2393 = vst [vmem:[%s331 + $0x10] sm:$0xff] %v2361
        %2394 = vst [vmem:[%s331 + $0x18] sm:$0xff] %v2362
        %2395 = vst [vmem:[%s331 + $0x20] sm:$0xff] %v2363
        %2396 = vst [vmem:[%s331 + $0x28] sm:$0xff] %v2364
        %2397 = vst [vmem:[%s331 + $0x30] sm:$0xff] %v2365
        %2398 = vst [vmem:[%s331 + $0x38] sm:$0xff] %v2366
        %2399 = vst [vmem:[%s331 + $0x40] sm:$0xff] %v2367
        %2400 = vst [vmem:[%s331 + $0x48] sm:$0xff] %v2368
        %2401 = vst [vmem:[%s331 + $0x50] sm:$0xff] %v2369
        %2402 = vst [vmem:[%s331 + $0x58] sm:$0xff] %v2370
        %2403 = vst [vmem:[%s331 + $0x60] sm:$0xff] %v2371
        %2404 = vst [vmem:[%s331 + $0x68] sm:$0xff] %v2372
        %2405 = vst [vmem:[%s331 + $0x70] sm:$0xff] %v2373
        %2406 = vst [vmem:[%s331 + $0x78] sm:$0xff] %v2374
        %2407 = vst [vmem:[%s331 + $0x80] sm:$0xff] %v2375
        %2408 = vst [vmem:[%s331 + $0x88] sm:$0xff] %v2376
        %2409 = vst [vmem:[%s331 + $0x90] sm:$0xff] %v2377
        %2410 = vst [vmem:[%s331 + $0x98] sm:$0xff] %v2378
        %2411 = vst [vmem:[%s331 + $0xa0] sm:$0xff] %v2379
        %2412 = vst [vmem:[%s331 + $0xa8] sm:$0xff] %v2380
        %2413 = vst [vmem:[%s331 + $0xb0] sm:$0xff] %v2381
        %2414 = vst [vmem:[%s331 + $0xb8] sm:$0xff] %v2382
        %2415 = vst [vmem:[%s331 + $0xc0] sm:$0xff] %v2383
        %2416 = vst [vmem:[%s331 + $0xc8] sm:$0xff] %v2384
        %2417 = vst [vmem:[%s331 + $0xd0] sm:$0xff] %v2385
        %2418 = vst [vmem:[%s331 + $0xd8] sm:$0xff] %v2386
        %2419 = vst [vmem:[%s331 + $0xe0] sm:$0xff] %v2387
        %2420 = vst [vmem:[%s331 + $0xe8] sm:$0xff] %v2388
        %2421 = vst [vmem:[%s331 + $0xf0] sm:$0xff] %v2389
        %2422 = vst [vmem:[%s331 + $0xf8] sm:$0xff] %v2390
        %2423 = vst.msk [vmem:[#allocation2] sm:$0xff] %vm1813, %v1141
        %2424 = vst.msk [vmem:[#allocation2 + $0x8] sm:$0xff] %vm1813, %v1142
        %2425 = vst.msk [vmem:[#allocation2 + $0x10] sm:$0xff] %vm1813, %v1143
        %2426 = vst.msk [vmem:[#allocation2 + $0x18] sm:$0xff] %vm1813, %v1144
        %2427 = vst.msk [vmem:[#allocation2 + $0x20] sm:$0xff] %vm1813, %v1145
        %2428 = vst.msk [vmem:[#allocation2 + $0x28] sm:$0xff] %vm1813, %v1146
        %2429 = vst.msk [vmem:[#allocation2 + $0x30] sm:$0xff] %vm1813, %v1147
        %2430 = vst.msk [vmem:[#allocation2 + $0x38] sm:$0xff] %vm1813, %v1148
        %2431 = vst.msk [vmem:[#allocation2 + $0x40] sm:$0xff] %vm1813, %v1149
        %2432 = vst.msk [vmem:[#allocation2 + $0x48] sm:$0xff] %vm1813, %v1150
        %2433 = vst.msk [vmem:[#allocation2 + $0x50] sm:$0xff] %vm1813, %v1151
        %2434 = vst.msk [vmem:[#allocation2 + $0x58] sm:$0xff] %vm1813, %v1152
        %2435 = vst.msk [vmem:[#allocation2 + $0x60] sm:$0xff] %vm1813, %v1153
        %2436 = vst.msk [vmem:[#allocation2 + $0x68] sm:$0xff] %vm1813, %v1154
        %2437 = vst.msk [vmem:[#allocation2 + $0x70] sm:$0xff] %vm1813, %v1155
        %2438 = vst.msk [vmem:[#allocation2 + $0x78] sm:$0xff] %vm1813, %v1156
        %2439 = vst.msk [vmem:[#allocation2 + $0x80] sm:$0xff] %vm1813, %v1157
        %2440 = vst.msk [vmem:[#allocation2 + $0x88] sm:$0xff] %vm1813, %v1158
        %2441 = vst.msk [vmem:[#allocation2 + $0x90] sm:$0xff] %vm1813, %v1159
        %2442 = vst.msk [vmem:[#allocation2 + $0x98] sm:$0xff] %vm1813, %v1160
        %2443 = vst.msk [vmem:[#allocation2 + $0xa0] sm:$0xff] %vm1813, %v1161
        %2444 = vst.msk [vmem:[#allocation2 + $0xa8] sm:$0xff] %vm1813, %v1162
        %2445 = vst.msk [vmem:[#allocation2 + $0xb0] sm:$0xff] %vm1813, %v1163
        %2446 = vst.msk [vmem:[#allocation2 + $0xb8] sm:$0xff] %vm1813, %v1164
        %2447 = vst.msk [vmem:[#allocation2 + $0xc0] sm:$0xff] %vm1813, %v1165
        %2448 = vst.msk [vmem:[#allocation2 + $0xc8] sm:$0xff] %vm1813, %v1166
        %2449 = vst.msk [vmem:[#allocation2 + $0xd0] sm:$0xff] %vm1813, %v1167
        %2450 = vst.msk [vmem:[#allocation2 + $0xd8] sm:$0xff] %vm1813, %v1168
        %2451 = vst.msk [vmem:[#allocation2 + $0xe0] sm:$0xff] %vm1813, %v1169
        %2452 = vst.msk [vmem:[#allocation2 + $0xe8] sm:$0xff] %vm1813, %v1170
        %2453 = vst.msk [vmem:[#allocation2 + $0xf0] sm:$0xff] %vm1813, %v1171
        %2454 = vst.msk [vmem:[#allocation2 + $0xf8] sm:$0xff] %vm1813, %v1172
        // Predicated region
        $region49: #{tpu_custom_call.1} parent=39 // pred_check
          %p2455 = pneg %p359
        $region50: #{tpu_custom_call.1} parent=39 // pred_check_branch
          %2457 = sbr.rel (%p2455) target = $region52
        $region51: #{tpu_custom_call.1} parent=39 // pred_region
          %v2458 = vld [vmem:[#allocation3] sm:$0xff]
          %v2459 = vld [vmem:[#allocation3 + $0x8] sm:$0xff]
          %v2460 = vld [vmem:[#allocation3 + $0x10] sm:$0xff]
          %v2461 = vld [vmem:[#allocation3 + $0x18] sm:$0xff]
          %v2462 = vld [vmem:[#allocation3 + $0x20] sm:$0xff]
          %v2463 = vld [vmem:[#allocation3 + $0x28] sm:$0xff]
          %v2464 = vld [vmem:[#allocation3 + $0x30] sm:$0xff]
          %v2465 = vld [vmem:[#allocation3 + $0x38] sm:$0xff]
          %v2466 = vld [vmem:[#allocation3 + $0x40] sm:$0xff]
          %v2467 = vld [vmem:[#allocation3 + $0x48] sm:$0xff]
          %v2468 = vld [vmem:[#allocation3 + $0x50] sm:$0xff]
          %v2469 = vld [vmem:[#allocation3 + $0x58] sm:$0xff]
          %v2470 = vld [vmem:[#allocation3 + $0x60] sm:$0xff]
          %v2471 = vld [vmem:[#allocation3 + $0x68] sm:$0xff]
          %v2472 = vld [vmem:[#allocation3 + $0x70] sm:$0xff]
          %v2473 = vld [vmem:[#allocation3 + $0x78] sm:$0xff]
          %v2474 = vld [vmem:[#allocation3 + $0x80] sm:$0xff]
          %v2475 = vld [vmem:[#allocation3 + $0x88] sm:$0xff]
          %v2476 = vld [vmem:[#allocation3 + $0x90] sm:$0xff]
          %v2477 = vld [vmem:[#allocation3 + $0x98] sm:$0xff]
          %v2478 = vld [vmem:[#allocation3 + $0xa0] sm:$0xff]
          %v2479 = vld [vmem:[#allocation3 + $0xa8] sm:$0xff]
          %v2480 = vld [vmem:[#allocation3 + $0xb0] sm:$0xff]
          %v2481 = vld [vmem:[#allocation3 + $0xb8] sm:$0xff]
          %v2482 = vld [vmem:[#allocation3 + $0xc0] sm:$0xff]
          %v2483 = vld [vmem:[#allocation3 + $0xc8] sm:$0xff]
          %v2484 = vld [vmem:[#allocation3 + $0xd0] sm:$0xff]
          %v2485 = vld [vmem:[#allocation3 + $0xd8] sm:$0xff]
          %v2486 = vld [vmem:[#allocation3 + $0xe0] sm:$0xff]
          %v2487 = vld [vmem:[#allocation3 + $0xe8] sm:$0xff]
          %v2488 = vld [vmem:[#allocation3 + $0xf0] sm:$0xff]
          %v2489 = vld [vmem:[#allocation3 + $0xf8] sm:$0xff]
          %v2490 = vrcp.pop %v2458
          %v2491 = vrcp.pop %v2459
          %v2492 = vrcp.pop %v2460
          %v2493 = vrcp.pop %v2461
          %v2494 = vrcp.pop %v2462
          %v2495 = vrcp.pop %v2463
          %v2496 = vrcp.pop %v2464
          %v2497 = vrcp.pop %v2465
          %v2498 = vrcp.pop %v2466
          %v2499 = vrcp.pop %v2467
          %v2500 = vrcp.pop %v2468
          %v2501 = vrcp.pop %v2469
          %v2502 = vrcp.pop %v2470
          %v2503 = vrcp.pop %v2471
          %v2504 = vrcp.pop %v2472
          %v2505 = vrcp.pop %v2473
          %v2506 = vrcp.pop %v2474
          %v2507 = vrcp.pop %v2475
          %v2508 = vrcp.pop %v2476
          %v2509 = vrcp.pop %v2477
          %v2510 = vrcp.pop %v2478
          %v2511 = vrcp.pop %v2479
          %v2512 = vrcp.pop %v2480
          %v2513 = vrcp.pop %v2481
          %v2514 = vrcp.pop %v2482
          %v2515 = vrcp.pop %v2483
          %v2516 = vrcp.pop %v2484
          %v2517 = vrcp.pop %v2485
          %v2518 = vrcp.pop %v2486
          %v2519 = vrcp.pop %v2487
          %v2520 = vrcp.pop %v2488
          %v2521 = vrcp.pop %v2489
          %s2522 = sld [smem:[#allocation4]]
          %v2523 = vld [vmem:[%s331] sm:$0xff]
          %v2524 = vld [vmem:[%s331 + $0x8] sm:$0xff]
          %v2525 = vld [vmem:[%s331 + $0x10] sm:$0xff]
          %v2526 = vld [vmem:[%s331 + $0x18] sm:$0xff]
          %v2527 = vld [vmem:[%s331 + $0x20] sm:$0xff]
          %v2528 = vld [vmem:[%s331 + $0x28] sm:$0xff]
          %v2529 = vld [vmem:[%s331 + $0x30] sm:$0xff]
          %v2530 = vld [vmem:[%s331 + $0x38] sm:$0xff]
          %v2531 = vld [vmem:[%s331 + $0x40] sm:$0xff]
          %v2532 = vld [vmem:[%s331 + $0x48] sm:$0xff]
          %v2533 = vld [vmem:[%s331 + $0x50] sm:$0xff]
          %v2534 = vld [vmem:[%s331 + $0x58] sm:$0xff]
          %v2535 = vld [vmem:[%s331 + $0x60] sm:$0xff]
          %v2536 = vld [vmem:[%s331 + $0x68] sm:$0xff]
          %v2537 = vld [vmem:[%s331 + $0x70] sm:$0xff]
          %v2538 = vld [vmem:[%s331 + $0x78] sm:$0xff]
          %v2539 = vld [vmem:[%s331 + $0x80] sm:$0xff]
          %v2540 = vld [vmem:[%s331 + $0x88] sm:$0xff]
          %v2541 = vld [vmem:[%s331 + $0x90] sm:$0xff]
          %v2542 = vld [vmem:[%s331 + $0x98] sm:$0xff]
          %v2543 = vld [vmem:[%s331 + $0xa0] sm:$0xff]
          %v2544 = vld [vmem:[%s331 + $0xa8] sm:$0xff]
          %v2545 = vld [vmem:[%s331 + $0xb0] sm:$0xff]
          %v2546 = vld [vmem:[%s331 + $0xb8] sm:$0xff]
          %v2547 = vld [vmem:[%s331 + $0xc0] sm:$0xff]
          %v2548 = vld [vmem:[%s331 + $0xc8] sm:$0xff]
          %v2549 = vld [vmem:[%s331 + $0xd0] sm:$0xff]
          %v2550 = vld [vmem:[%s331 + $0xd8] sm:$0xff]
          %v2551 = vld [vmem:[%s331 + $0xe0] sm:$0xff]
          %v2552 = vld [vmem:[%s331 + $0xe8] sm:$0xff]
          %v2553 = vld [vmem:[%s331 + $0xf0] sm:$0xff]
          %v2554 = vld [vmem:[%s331 + $0xf8] sm:$0xff]
          %2556 = vset.pattern.permute.xlu0 0
          %2557 = vperm.xlu0 %2556, %v2490
          %v2558 = vpop.permute.xlu0 %2557
          %2561 = vset.pattern.permute.xlu0 0
          %2562 = vperm.xlu0 %2561, %v2491
          %v2563 = vpop.permute.xlu0 %2562
          %2566 = vset.pattern.permute.xlu0 0
          %2567 = vperm.xlu0 %2566, %v2492
          %v2568 = vpop.permute.xlu0 %2567
          %2571 = vset.pattern.permute.xlu0 0
          %2572 = vperm.xlu0 %2571, %v2493
          %v2573 = vpop.permute.xlu0 %2572
          %2576 = vset.pattern.permute.xlu0 0
          %2577 = vperm.xlu0 %2576, %v2494
          %v2578 = vpop.permute.xlu0 %2577
          %2581 = vset.pattern.permute.xlu0 0
          %2582 = vperm.xlu0 %2581, %v2495
          %v2583 = vpop.permute.xlu0 %2582
          %2586 = vset.pattern.permute.xlu0 0
          %2587 = vperm.xlu0 %2586, %v2496
          %v2588 = vpop.permute.xlu0 %2587
          %2591 = vset.pattern.permute.xlu0 0
          %2592 = vperm.xlu0 %2591, %v2497
          %v2593 = vpop.permute.xlu0 %2592
          %2596 = vset.pattern.permute.xlu0 0
          %2597 = vperm.xlu0 %2596, %v2498
          %v2598 = vpop.permute.xlu0 %2597
          %2601 = vset.pattern.permute.xlu0 0
          %2602 = vperm.xlu0 %2601, %v2499
          %v2603 = vpop.permute.xlu0 %2602
          %2606 = vset.pattern.permute.xlu0 0
          %2607 = vperm.xlu0 %2606, %v2500
          %v2608 = vpop.permute.xlu0 %2607
          %2611 = vset.pattern.permute.xlu0 0
          %2612 = vperm.xlu0 %2611, %v2501
          %v2613 = vpop.permute.xlu0 %2612
          %2616 = vset.pattern.permute.xlu0 0
          %2617 = vperm.xlu0 %2616, %v2502
          %v2618 = vpop.permute.xlu0 %2617
          %2621 = vset.pattern.permute.xlu0 0
          %2622 = vperm.xlu0 %2621, %v2503
          %v2623 = vpop.permute.xlu0 %2622
          %2626 = vset.pattern.permute.xlu0 0
          %2627 = vperm.xlu0 %2626, %v2504
          %v2628 = vpop.permute.xlu0 %2627
          %2631 = vset.pattern.permute.xlu0 0
          %2632 = vperm.xlu0 %2631, %v2505
          %v2633 = vpop.permute.xlu0 %2632
          %2636 = vset.pattern.permute.xlu0 0
          %2637 = vperm.xlu0 %2636, %v2506
          %v2638 = vpop.permute.xlu0 %2637
          %2641 = vset.pattern.permute.xlu0 0
          %2642 = vperm.xlu0 %2641, %v2507
          %v2643 = vpop.permute.xlu0 %2642
          %2646 = vset.pattern.permute.xlu0 0
          %2647 = vperm.xlu0 %2646, %v2508
          %v2648 = vpop.permute.xlu0 %2647
          %2651 = vset.pattern.permute.xlu0 0
          %2652 = vperm.xlu0 %2651, %v2509
          %v2653 = vpop.permute.xlu0 %2652
          %2656 = vset.pattern.permute.xlu0 0
          %2657 = vperm.xlu0 %2656, %v2510
          %v2658 = vpop.permute.xlu0 %2657
          %2661 = vset.pattern.permute.xlu0 0
          %2662 = vperm.xlu0 %2661, %v2511
          %v2663 = vpop.permute.xlu0 %2662
          %2666 = vset.pattern.permute.xlu0 0
          %2667 = vperm.xlu0 %2666, %v2512
          %v2668 = vpop.permute.xlu0 %2667
          %2671 = vset.pattern.permute.xlu0 0
          %2672 = vperm.xlu0 %2671, %v2513
          %v2673 = vpop.permute.xlu0 %2672
          %2676 = vset.pattern.permute.xlu0 0
          %2677 = vperm.xlu0 %2676, %v2514
          %v2678 = vpop.permute.xlu0 %2677
          %2681 = vset.pattern.permute.xlu0 0
          %2682 = vperm.xlu0 %2681, %v2515
          %v2683 = vpop.permute.xlu0 %2682
          %2686 = vset.pattern.permute.xlu0 0
          %2687 = vperm.xlu0 %2686, %v2516
          %v2688 = vpop.permute.xlu0 %2687
          %2691 = vset.pattern.permute.xlu0 0
          %2692 = vperm.xlu0 %2691, %v2517
          %v2693 = vpop.permute.xlu0 %2692
          %2696 = vset.pattern.permute.xlu0 0
          %2697 = vperm.xlu0 %2696, %v2518
          %v2698 = vpop.permute.xlu0 %2697
          %2701 = vset.pattern.permute.xlu0 0
          %2702 = vperm.xlu0 %2701, %v2519
          %v2703 = vpop.permute.xlu0 %2702
          %2706 = vset.pattern.permute.xlu0 0
          %2707 = vperm.xlu0 %2706, %v2520
          %v2708 = vpop.permute.xlu0 %2707
          %2711 = vset.pattern.permute.xlu0 0
          %2712 = vperm.xlu0 %2711, %v2521
          %v2713 = vpop.permute.xlu0 %2712
          %v2715 = vmul.f32 %v2523, %v2558
          %v2716 = vmul.f32 %v2524, %v2563
          %v2717 = vmul.f32 %v2525, %v2568
          %v2718 = vmul.f32 %v2526, %v2573
          %v2719 = vmul.f32 %v2527, %v2578
          %v2720 = vmul.f32 %v2528, %v2583
          %v2721 = vmul.f32 %v2529, %v2588
          %v2722 = vmul.f32 %v2530, %v2593
          %v2723 = vmul.f32 %v2531, %v2598
          %v2724 = vmul.f32 %v2532, %v2603
          %v2725 = vmul.f32 %v2533, %v2608
          %v2726 = vmul.f32 %v2534, %v2613
          %v2727 = vmul.f32 %v2535, %v2618
          %v2728 = vmul.f32 %v2536, %v2623
          %v2729 = vmul.f32 %v2537, %v2628
          %v2730 = vmul.f32 %v2538, %v2633
          %v2731 = vmul.f32 %v2539, %v2638
          %v2732 = vmul.f32 %v2540, %v2643
          %v2733 = vmul.f32 %v2541, %v2648
          %v2734 = vmul.f32 %v2542, %v2653
          %v2735 = vmul.f32 %v2543, %v2658
          %v2736 = vmul.f32 %v2544, %v2663
          %v2737 = vmul.f32 %v2545, %v2668
          %v2738 = vmul.f32 %v2546, %v2673
          %v2739 = vmul.f32 %v2547, %v2678
          %v2740 = vmul.f32 %v2548, %v2683
          %v2741 = vmul.f32 %v2549, %v2688
          %v2742 = vmul.f32 %v2550, %v2693
          %v2743 = vmul.f32 %v2551, %v2698
          %v2744 = vmul.f32 %v2552, %v2703
          %v2745 = vmul.f32 %v2553, %v2708
          %v2746 = vmul.f32 %v2554, %v2713
          %v2747 = vstv %s2522
          %v2748 = vmul.f32 %v2747, %v2715
          %v2749 = vmul.f32 %v2747, %v2716
          %v2750 = vmul.f32 %v2747, %v2717
          %v2751 = vmul.f32 %v2747, %v2718
          %v2752 = vmul.f32 %v2747, %v2719
          %v2753 = vmul.f32 %v2747, %v2720
          %v2754 = vmul.f32 %v2747, %v2721
          %v2755 = vmul.f32 %v2747, %v2722
          %v2756 = vmul.f32 %v2747, %v2723
          %v2757 = vmul.f32 %v2747, %v2724
          %v2758 = vmul.f32 %v2747, %v2725
          %v2759 = vmul.f32 %v2747, %v2726
          %v2760 = vmul.f32 %v2747, %v2727
          %v2761 = vmul.f32 %v2747, %v2728
          %v2762 = vmul.f32 %v2747, %v2729
          %v2763 = vmul.f32 %v2747, %v2730
          %v2764 = vmul.f32 %v2747, %v2731
          %v2765 = vmul.f32 %v2747, %v2732
          %v2766 = vmul.f32 %v2747, %v2733
          %v2767 = vmul.f32 %v2747, %v2734
          %v2768 = vmul.f32 %v2747, %v2735
          %v2769 = vmul.f32 %v2747, %v2736
          %v2770 = vmul.f32 %v2747, %v2737
          %v2771 = vmul.f32 %v2747, %v2738
          %v2772 = vmul.f32 %v2747, %v2739
          %v2773 = vmul.f32 %v2747, %v2740
          %v2774 = vmul.f32 %v2747, %v2741
          %v2775 = vmul.f32 %v2747, %v2742
          %v2776 = vmul.f32 %v2747, %v2743
          %v2777 = vmul.f32 %v2747, %v2744
          %v2778 = vmul.f32 %v2747, %v2745
          %v2779 = vmul.f32 %v2747, %v2746
          %v2780 = vld [vmem:[%s350] sm:$0xff]
          %v2781 = vld [vmem:[%s350 + $0x8] sm:$0xff]
          %v2782 = vld [vmem:[%s350 + $0x10] sm:$0xff]
          %v2783 = vld [vmem:[%s350 + $0x18] sm:$0xff]
          %v2784 = vld [vmem:[%s350 + $0x20] sm:$0xff]
          %v2785 = vld [vmem:[%s350 + $0x28] sm:$0xff]
          %v2786 = vld [vmem:[%s350 + $0x30] sm:$0xff]
          %v2787 = vld [vmem:[%s350 + $0x38] sm:$0xff]
          %v2788 = vld [vmem:[%s350 + $0x40] sm:$0xff]
          %v2789 = vld [vmem:[%s350 + $0x48] sm:$0xff]
          %v2790 = vld [vmem:[%s350 + $0x50] sm:$0xff]
          %v2791 = vld [vmem:[%s350 + $0x58] sm:$0xff]
          %v2792 = vld [vmem:[%s350 + $0x60] sm:$0xff]
          %v2793 = vld [vmem:[%s350 + $0x68] sm:$0xff]
          %v2794 = vld [vmem:[%s350 + $0x70] sm:$0xff]
          %v2795 = vld [vmem:[%s350 + $0x78] sm:$0xff]
          %v2796 = vld [vmem:[%s350 + $0x80] sm:$0xff]
          %v2797 = vld [vmem:[%s350 + $0x88] sm:$0xff]
          %v2798 = vld [vmem:[%s350 + $0x90] sm:$0xff]
          %v2799 = vld [vmem:[%s350 + $0x98] sm:$0xff]
          %v2800 = vld [vmem:[%s350 + $0xa0] sm:$0xff]
          %v2801 = vld [vmem:[%s350 + $0xa8] sm:$0xff]
          %v2802 = vld [vmem:[%s350 + $0xb0] sm:$0xff]
          %v2803 = vld [vmem:[%s350 + $0xb8] sm:$0xff]
          %v2804 = vld [vmem:[%s350 + $0xc0] sm:$0xff]
          %v2805 = vld [vmem:[%s350 + $0xc8] sm:$0xff]
          %v2806 = vld [vmem:[%s350 + $0xd0] sm:$0xff]
          %v2807 = vld [vmem:[%s350 + $0xd8] sm:$0xff]
          %v2808 = vld [vmem:[%s350 + $0xe0] sm:$0xff]
          %v2809 = vld [vmem:[%s350 + $0xe8] sm:$0xff]
          %v2810 = vld [vmem:[%s350 + $0xf0] sm:$0xff]
          %v2811 = vld [vmem:[%s350 + $0xf8] sm:$0xff]
          %v2812 = vadd.f32 %v2748, %v2780
          %v2813 = vadd.f32 %v2749, %v2781
          %v2814 = vadd.f32 %v2750, %v2782
          %v2815 = vadd.f32 %v2751, %v2783
          %v2816 = vadd.f32 %v2752, %v2784
          %v2817 = vadd.f32 %v2753, %v2785
          %v2818 = vadd.f32 %v2754, %v2786
          %v2819 = vadd.f32 %v2755, %v2787
          %v2820 = vadd.f32 %v2756, %v2788
          %v2821 = vadd.f32 %v2757, %v2789
          %v2822 = vadd.f32 %v2758, %v2790
          %v2823 = vadd.f32 %v2759, %v2791
          %v2824 = vadd.f32 %v2760, %v2792
          %v2825 = vadd.f32 %v2761, %v2793
          %v2826 = vadd.f32 %v2762, %v2794
          %v2827 = vadd.f32 %v2763, %v2795
          %v2828 = vadd.f32 %v2764, %v2796
          %v2829 = vadd.f32 %v2765, %v2797
          %v2830 = vadd.f32 %v2766, %v2798
          %v2831 = vadd.f32 %v2767, %v2799
          %v2832 = vadd.f32 %v2768, %v2800
          %v2833 = vadd.f32 %v2769, %v2801
          %v2834 = vadd.f32 %v2770, %v2802
          %v2835 = vadd.f32 %v2771, %v2803
          %v2836 = vadd.f32 %v2772, %v2804
          %v2837 = vadd.f32 %v2773, %v2805
          %v2838 = vadd.f32 %v2774, %v2806
          %v2839 = vadd.f32 %v2775, %v2807
          %v2840 = vadd.f32 %v2776, %v2808
          %v2841 = vadd.f32 %v2777, %v2809
          %v2842 = vadd.f32 %v2778, %v2810
          %v2843 = vadd.f32 %v2779, %v2811
          %2844 = vst [vmem:[%s331] sm:$0xff] %v2812
          %2845 = vst [vmem:[%s331 + $0x8] sm:$0xff] %v2813
          %2846 = vst [vmem:[%s331 + $0x10] sm:$0xff] %v2814
          %2847 = vst [vmem:[%s331 + $0x18] sm:$0xff] %v2815
          %2848 = vst [vmem:[%s331 + $0x20] sm:$0xff] %v2816
          %2849 = vst [vmem:[%s331 + $0x28] sm:$0xff] %v2817
          %2850 = vst [vmem:[%s331 + $0x30] sm:$0xff] %v2818
          %2851 = vst [vmem:[%s331 + $0x38] sm:$0xff] %v2819
          %2852 = vst [vmem:[%s331 + $0x40] sm:$0xff] %v2820
          %2853 = vst [vmem:[%s331 + $0x48] sm:$0xff] %v2821
          %2854 = vst [vmem:[%s331 + $0x50] sm:$0xff] %v2822
          %2855 = vst [vmem:[%s331 + $0x58] sm:$0xff] %v2823
          %2856 = vst [vmem:[%s331 + $0x60] sm:$0xff] %v2824
          %2857 = vst [vmem:[%s331 + $0x68] sm:$0xff] %v2825
          %2858 = vst [vmem:[%s331 + $0x70] sm:$0xff] %v2826
          %2859 = vst [vmem:[%s331 + $0x78] sm:$0xff] %v2827
          %2860 = vst [vmem:[%s331 + $0x80] sm:$0xff] %v2828
          %2861 = vst [vmem:[%s331 + $0x88] sm:$0xff] %v2829
          %2862 = vst [vmem:[%s331 + $0x90] sm:$0xff] %v2830
          %2863 = vst [vmem:[%s331 + $0x98] sm:$0xff] %v2831
          %2864 = vst [vmem:[%s331 + $0xa0] sm:$0xff] %v2832
          %2865 = vst [vmem:[%s331 + $0xa8] sm:$0xff] %v2833
          %2866 = vst [vmem:[%s331 + $0xb0] sm:$0xff] %v2834
          %2867 = vst [vmem:[%s331 + $0xb8] sm:$0xff] %v2835
          %2868 = vst [vmem:[%s331 + $0xc0] sm:$0xff] %v2836
          %2869 = vst [vmem:[%s331 + $0xc8] sm:$0xff] %v2837
          %2870 = vst [vmem:[%s331 + $0xd0] sm:$0xff] %v2838
          %2871 = vst [vmem:[%s331 + $0xd8] sm:$0xff] %v2839
          %2872 = vst [vmem:[%s331 + $0xe0] sm:$0xff] %v2840
          %2873 = vst [vmem:[%s331 + $0xe8] sm:$0xff] %v2841
          %2874 = vst [vmem:[%s331 + $0xf0] sm:$0xff] %v2842
          %2875 = vst [vmem:[%s331 + $0xf8] sm:$0xff] %v2843
        $region52: #{tpu_custom_call.1} parent=39 // pred_fallthru
          _
        %s2876 = sand.u32 %s181, 1
        %s2877 = scalar_lea.sflag [#allocation7], %s2876
        %s2878 = sand.u32 %s181, 1
        %s2879 = smul.addr %s2878, 256
        %s2880 = scalar_lea.vmem [#allocation8], %s2879
        // Predicated region
        $region53: #{tpu_custom_call.1} parent=39 // pred_check
          %p2881 = pneg %p191
        $region54: #{tpu_custom_call.1} parent=39 // pred_check_branch
          %2883 = sbr.rel (%p2881) target = $region56
        $region55: #{tpu_custom_call.1} parent=39 // pred_region
          %s2884 = smul.u32 32, %s29
          %s2886 = ssub.s32 4096, 4096
          %2887 = vsyncadd %s2877, %s2886
          %s2888 = smul.addr %s28, 32
          %s2889 = sadd.s32 %s2884, %s2888
          %s2890 = smul.addr %s2889, 128
          %s2891 = scalar_lea.hbm %s5, %s2890
          %s2892 = sshll.u32 %s2880, 4
          %s2893 = int_to_ptr.vmem [resolvable:$true] %s2892
          %2898 = dma.vmem_to_hbm [thread:$0]  %s2893, 4096, %s2891, %s2877, 128, 128, 8
        $region56: #{tpu_custom_call.1} parent=39 // pred_fallthru
          _
      $region40: #{tpu_custom_call.1} parent=5 // pred_fallthru
        _
      %p2899 = scmp.le.s32.totalorder 2, %s18
      // Predicated region
      $region57: #{tpu_custom_call.1} parent=5 // pred_check
        %p2900 = pneg %p2899
      $region58: #{tpu_custom_call.1} parent=5 // pred_check_branch
        %2902 = sbr.rel (%p2900) target = $region60
      $region59: #{tpu_custom_call.1} parent=5 // pred_region
        %s2903 = ssub.s32 %s18, 2
        // Predicated region
        $region61: #{tpu_custom_call.1} parent=59 // pred_check
          %p2904 = pneg %p197
        $region62: #{tpu_custom_call.1} parent=59 // pred_check_branch
          %2906 = sbr.rel (%p2904) target = $region64
        $region63: #{tpu_custom_call.1} parent=59 // pred_region
          %s2907 = sand.u32 %s182, 1
          %s2908 = scalar_lea.sflag [#allocation7], %s2907
          %s2909 = sand.u32 %s182, 1
          %s2910 = smul.addr %s2909, 256
          %s2911 = scalar_lea.vmem [#allocation8], %s2910
          %2912 = dma.done %s2908, 4096
        $region64: #{tpu_custom_call.1} parent=59 // pred_fallthru
          _
      $region60: #{tpu_custom_call.1} parent=5 // pred_fallthru
        _
    $region6: #{tpu_custom_call.1} parent=1 // loop_footer
      %s22 = sadd.s32 1, %s18
    $region7: #{tpu_custom_call.1} parent=1 // loop_footer_branch
      %17 = sbr.rel target = $region3
    $region8: #{tpu_custom_call.1} parent=1 // loop_exit
      _
    %2913 = vsyncpa [#allocation6], 1
    %s2914 = scalar_lea.sflag [#allocation6], 1
    %2915 = vsyncpa %s2914, 1
    %2916 = vsyncpa [#allocation7], 1
    %s2917 = scalar_lea.sflag [#allocation7], 1
    %2918 = vsyncpa %s2917, 1

</llo_original>
